<compile_context>
chip_gen: v7x
topology: tpu7x:2x2x1
jax: 0.10.0
libtpu: 0.0.40
codegen_flags: <defaults>
</compile_context>

<pallas_src>
import functools

import jax
import jax.numpy as jnp
from jax.experimental import pallas as pl
from jax.experimental.pallas import tpu as pltpu


def _round_up(x, m):
    return ((x + m - 1) // m) * m


def _ceil_div(a, b):
    return -(-a // b)


# ----------------------------- Pallas kernels -----------------------------

def _cgemm_kernel(pr_ref, pi_ref, w0_ref, w1_ref, b_ref, o_ref, *, tk):
    """One K-step of the fused complex GEMM.

    grid = (M_tiles, K_tiles); K is last ("arbitrary") so the f32 output tile
    stays VMEM-resident across the reduction and we accumulate straight into
    it.  W0/W1/bias are full-array resident blocks; the current K rows are
    sliced in-kernel (128-aligned, whole sublane tiles).
    """
    k = pl.program_id(1)

    @pl.when(k == 0)
    def _init():
        o_ref[...] = jnp.broadcast_to(b_ref[...], o_ref.shape)

    row = pl.multiple_of(k * tk, 128)
    w0 = w0_ref[pl.ds(row, tk), :]
    w1 = w1_ref[pl.ds(row, tk), :]
    o_ref[...] += (
        jnp.dot(pr_ref[...], w0, preferred_element_type=jnp.float32)
        + jnp.dot(pi_ref[...], w1, preferred_element_type=jnp.float32))


def _cgemm_power_kernel(pr_ref, pi_ref, w0_ref, w1_ref, b_ref, o_ref, acc_ref,
                        *, tk, ocp):
    """Same GEMM but fuses take_power: out = o_r**2 + o_i**2.

    Each output half is padded to a 128-lane boundary (ocp) so the epilogue
    column slices are lane-aligned (no cross-lane shuffles).
    """
    k = pl.program_id(1)

    @pl.when(k == 0)
    def _init():
        acc_ref[...] = jnp.broadcast_to(b_ref[...], acc_ref.shape)

    row = pl.multiple_of(k * tk, 128)
    w0 = w0_ref[pl.ds(row, tk), :]
    w1 = w1_ref[pl.ds(row, tk), :]
    acc_ref[...] += (
        jnp.dot(pr_ref[...], w0, preferred_element_type=jnp.float32)
        + jnp.dot(pi_ref[...], w1, preferred_element_type=jnp.float32))

    @pl.when(k == pl.num_programs(1) - 1)
    def _finalize():
        acc = acc_ref[...]
        o_r = acc[:, :ocp]
        o_i = acc[:, ocp:]
        o_ref[...] = o_r * o_r + o_i * o_i


# ----------------------------- JAX glue ------------------------------------

def _im2col(x, kh, kw, stride, padding, dilation):
    """x: [N, C, H, W] -> patches [N*OH*OW, C*kh*kw] (C-major, matching OIHW)."""
    n, c, h, w = x.shape
    oh = (h + 2 * padding - dilation * (kh - 1) - 1) // stride + 1
    ow = (w + 2 * padding - dilation * (kw - 1) - 1) // stride + 1
    xp = jnp.pad(x, ((0, 0), (0, 0), (padding, padding), (padding, padding)))
    cols = []
    for i in range(kh):
        for j in range(kw):
            hi = i * dilation
            wi = j * dilation
            patch = xp[:, :,
                       hi: hi + (oh - 1) * stride + 1: stride,
                       wi: wi + (ow - 1) * stride + 1: stride]  # [N, C, OH, OW]
            cols.append(patch)
    # [N, C, KH*KW, OH, OW] -> [N, OH, OW, C, KH*KW] -> [M, K]
    cols = jnp.stack(cols, axis=2)
    patches = cols.transpose(0, 3, 4, 1, 2).reshape(n * oh * ow, c * kh * kw)
    return patches, oh, ow


def _vmem_bytes(tm, tk, kp, n_cols, n_out, power):
    """Conservative VMEM footprint of the kernel for the given tiling."""
    bf2, f4 = 2, 4
    p_bytes = 2 * tm * tk * bf2 * 2          # P_r + P_i tiles, double-buffered
    w_bytes = 2 * kp * n_cols * bf2 * 2      # W0 + W1, counted at 2 buffers
    b_bytes = 8 * n_cols * f4                # bias (sublane-padded), tiny
    o_bytes = tm * n_out * f4 * 2            # output tile, double-buffered
    acc_bytes = tm * n_cols * f4 if power else 0
    return p_bytes + w_bytes + b_bytes + o_bytes + acc_bytes


@functools.partial(jax.jit, static_argnames=("stride", "padding", "dilation",
                                             "take_power", "tm_cap", "tk_cap",
                                             "compute_dtype"))
def cconv2d_layer(x_r, x_i, w_r, b_r, w_i, b_i, *,
                  stride=1, padding=0, dilation=1, take_power=False,
                  tm_cap=512, tk_cap=2048, compute_dtype=jnp.bfloat16):
    """Forward of CConv2dLayer (batch_norm=None, act=None, dropout=0)."""
    n, c, h, w = x_r.shape
    oc, _, kh, kw = w_r.shape
    kdim = c * kh * kw

    # im2col (plain-JAX glue) in the compute dtype (half the HBM bytes of the
    # patch stream).  P_r / P_i stay SEPARATE arrays: no [M, 2K] concat copy.
    # TODO(synk): fuse im2col into the kernel (memory_space=pl.ANY + manual
    #             shifted-window DMAs) to remove the KH*KW HBM inflation.
    p_r, oh, ow = _im2col(x_r.astype(compute_dtype), kh, kw, stride, padding,
                          dilation)
    p_i, _, _ = _im2col(x_i.astype(compute_dtype), kh, kw, stride, padding,
                        dilation)

    m = n * oh * ow

    # Output-column packing.  Non-power path packs [o_r | o_i] tightly (the
    # wrapper slices the halves, so no in-kernel lane slicing); the power path
    # slices halves in-kernel, so each half is padded to a 128-lane boundary.
    if take_power:
        ocp = _round_up(oc, 128)
        n_cols = 2 * ocp
        n_out = ocp
        off_i = ocp
    else:
        ocp = 0
        n_cols = _round_up(2 * oc, 128)
        n_out = n_cols
        off_i = oc

    # Tile selection: keep the whole (packed) N dimension per output block so
    # the P stream is read from HBM exactly once; pick tk so K padding is
    # small while keeping k_tiles low (fewer f32 accumulator RMW passes).
    tm = min(tm_cap, _round_up(m, 8))
    k_tiles = max(1, _ceil_div(kdim, tk_cap))
    tk = _round_up(_ceil_div(kdim, k_tiles), 128)
    kp = tk * k_tiles

    # Bound the VMEM footprint (v7x has only 64 MiB per TensorCore).
    budget = 40 * 1024 * 1024
    while _vmem_bytes(tm, tk, kp, n_cols, n_out, take_power) > budget and tm > 128:
        tm = max(128, tm // 2)
    while _vmem_bytes(tm, tk, kp, n_cols, n_out, take_power) > budget and tk > 512:
        k_tiles += 1
        tk = _round_up(_ceil_div(kdim, k_tiles), 128)
        kp = tk * k_tiles
    # TODO(synk): if W0/W1 residency alone still exceeds the budget (huge
    #             C*KH*KW*OC), fall back to streaming (tk, n_cols) W blocks.

    mp = _round_up(m, tm)
    m_tiles = mp // tm

    p_r = jnp.pad(p_r, ((0, mp - m), (0, kp - kdim)))
    p_i = jnp.pad(p_i, ((0, mp - m), (0, kp - kdim)))

    # Block weights:  acc = P_r @ [W_r | W_i] + P_i @ [-W_i | W_r].
    wr2 = w_r.reshape(oc, kdim).T.astype(compute_dtype)   # [K, OC]
    wi2 = w_i.reshape(oc, kdim).T.astype(compute_dtype)
    w0 = jnp.zeros((kp, n_cols), compute_dtype)
    w0 = w0.at[:kdim, :oc].set(wr2)
    w0 = w0.at[:kdim, off_i:off_i + oc].set(wi2)
    w1 = jnp.zeros((kp, n_cols), compute_dtype)
    w1 = w1.at[:kdim, :oc].set(-wi2)
    w1 = w1.at[:kdim, off_i:off_i + oc].set(wr2)

    # Fused bias [b_r - b_i | b_r + b_i] in f32 (added to the f32 accumulator).
    b_big = jnp.zeros((1, n_cols), jnp.float32)
    b_big = b_big.at[0, :oc].set((b_r - b_i).astype(jnp.float32))
    b_big = b_big.at[0, off_i:off_i + oc].set((b_r + b_i).astype(jnp.float32))

    itemsize = jnp.dtype(compute_dtype).itemsize
    flops = 2 * mp * kp * n_cols * 2                      # two GEMMs per tile
    bytes_accessed = (2 * mp * kp * itemsize              # P_r + P_i, read once
                      + 2 * kp * n_cols * itemsize        # W0 + W1, fetched once
                      + mp * n_out * 4                    # f32 output writeback
                      + n_cols * 4)                       # bias
    cost = pl.CostEstimate(flops=flops, transcendentals=0,
                           bytes_accessed=bytes_accessed)

    vmem_limit = int(min(
        max(_vmem_bytes(tm, tk, kp, n_cols, n_out, take_power) + 4 * 1024 * 1024,
            16 * 1024 * 1024),
        48 * 1024 * 1024))
    params = pltpu.CompilerParams(
        dimension_semantics=("parallel", "arbitrary"),
        vmem_limit_bytes=vmem_limit)

    grid = (m_tiles, k_tiles)
    # Note: pipeline_mode=pl.Buffered(3) on the P specs could hide K-step DMA
    # boundaries further once W is resident; left at default depth 2.
    in_specs = [pl.BlockSpec((tm, tk), lambda i, k: (i, k)),        # P_r stream
                pl.BlockSpec((tm, tk), lambda i, k: (i, k)),        # P_i stream
                pl.BlockSpec((kp, n_cols), lambda i, k: (0, 0)),    # W0 resident
                pl.BlockSpec((kp, n_cols), lambda i, k: (0, 0)),    # W1 resident
                pl.BlockSpec((1, n_cols), lambda i, k: (0, 0))]     # bias resident

    if take_power:
        out = pl.pallas_call(
            functools.partial(_cgemm_power_kernel, tk=tk, ocp=ocp),
            out_shape=jax.ShapeDtypeStruct((mp, n_out), jnp.float32),
            grid_spec=pltpu.PrefetchScalarGridSpec(
                num_scalar_prefetch=0, grid=grid,
                in_specs=in_specs,
                out_specs=pl.BlockSpec((tm, n_out), lambda i, k: (i, 0)),
                scratch_shapes=[pltpu.VMEM((tm, n_cols), jnp.float32)]),
            compiler_params=params,
            cost_estimate=cost,
        )(p_r, p_i, w0, w1, b_big)
        return out[:m, :oc].reshape(n, oh, ow, oc).transpose(0, 3, 1, 2)

    out = pl.pallas_call(
        functools.partial(_cgemm_kernel, tk=tk),
        out_shape=jax.ShapeDtypeStruct((mp, n_cols), jnp.float32),
        grid_spec=pltpu.PrefetchScalarGridSpec(
            num_scalar_prefetch=0, grid=grid,
            in_specs=in_specs,
            out_specs=pl.BlockSpec((tm, n_cols), lambda i, k: (i, 0))),
        compiler_params=params,
        cost_estimate=cost,
    )(p_r, p_i, w0, w1, b_big)

    # TODO(synk): a NHWC-consuming caller could skip this transpose round trip;
    #             NCHW is kept to match the PyTorch module's output layout.
    o_r = out[:m, :oc].reshape(n, oh, ow, oc).transpose(0, 3, 1, 2)
    o_i = out[:m, off_i:off_i + oc].reshape(n, oh, ow, oc).transpose(0, 3, 1, 2)
    return o_r, o_i


# ----------------------------- reference (for sanity) ----------------------

def _ref_conv(x, w, b, stride, padding, dilation):
    out = jax.lax.conv_general_dilated(
        x, w, window_strides=(stride, stride),
        padding=[(padding, padding), (padding, padding)],
        rhs_dilation=(dilation, dilation),
        dimension_numbers=("NCHW", "OIHW", "NCHW"))
    return out + b.reshape(1, -1, 1, 1)


def _ref_cconv_layer(x_r, x_i, w_r, b_r, w_i, b_i, stride, padding, dilation):
    rr = _ref_conv(x_r, w_r, b_r, stride, padding, dilation)
    ii = _ref_conv(x_i, w_i, b_i, stride, padding, dilation)
    ir = _ref_conv(x_i, w_r, b_r, stride, padding, dilation)
    ri = _ref_conv(x_r, w_i, b_i, stride, padding, dilation)
    return rr - ii, ir + ri


# ----------------------------- main -----------------------------------------

if __name__ == "__main__":
    N, C, H, W = 2, 4, 16, 16
    OC, KH, KW = 8, 3, 3
    STRIDE, PAD, DIL = 1, 1, 1

    key = jax.random.PRNGKey(0)
    k1, k2, k3, k4, k5, k6 = jax.random.split(key, 6)

    x_r = jax.random.normal(k1, (N, C, H, W), jnp.float32)
    x_i = jax.random.normal(k2, (N, C, H, W), jnp.float32)

    # Deterministic "Kaiming-ish" scaled init for both conv_r and conv_i.
    fan_in = C * KH * KW
    scale = 1.0 / jnp.sqrt(jnp.float32(fan_in))
    w_r = jax.random.normal(k3, (OC, C, KH, KW), jnp.float32) * scale
    w_i = jax.random.normal(k4, (OC, C, KH, KW), jnp.float32) * scale
    b_r = jax.random.uniform(k5, (OC,), jnp.float32, -scale, scale)
    b_i = jax.random.uniform(k6, (OC,), jnp.float32, -scale, scale)

    o_r, o_i = cconv2d_layer(x_r, x_i, w_r, b_r, w_i, b_i,
                             stride=STRIDE, padding=PAD, dilation=DIL)
    o_r, o_i = jax.block_until_ready((o_r, o_i))

    # Sanity check against the (f32) XLA conv reference; tolerances account
    # for the bf16 operands / f32 accumulation in the kernel.
    r_r, r_i = _ref_cconv_layer(x_r, x_i, w_r, b_r, w_i, b_i, STRIDE, PAD, DIL)
    assert o_r.shape == (N, OC, H, W) and o_i.shape == (N, OC, H, W)
    assert jnp.allclose(o_r, r_r, atol=5e-2, rtol=5e-2)
    assert jnp.allclose(o_i, r_i, atol=5e-2, rtol=5e-2)

    # Also exercise the fused take_power path.
    power = jax.block_until_ready(
        cconv2d_layer(x_r, x_i, w_r, b_r, w_i, b_i,
                      stride=STRIDE, padding=PAD, dilation=DIL,
                      take_power=True))
    assert power.shape == (N, OC, H, W)
    assert jnp.allclose(power, r_r ** 2 + r_i ** 2, atol=1e-1, rtol=1e-1)

    print("KERNEL_OK")
</pallas_src>

<mosaic_0001>
module attributes {stable_mosaic.version = 11 : i64} {
  func.func @_cgemm_kernel(%arg0: i32, %arg1: i32, %arg2: memref<512x128xbf16, #tpu.memory_space<vmem>>, %arg3: memref<512x128xbf16, #tpu.memory_space<vmem>>, %arg4: memref<128x128xbf16, #tpu.memory_space<vmem>>, %arg5: memref<128x128xbf16, #tpu.memory_space<vmem>>, %arg6: memref<1x128xf32, #tpu.memory_space<vmem>>, %arg7: memref<512x128xf32, #tpu.memory_space<vmem>>) attributes {dimension_semantics = [#tpu.dimension_semantics<parallel>, #tpu.dimension_semantics<arbitrary>], iteration_bounds = array<i64: 1, 1>, scalar_prefetch = 0 : i64, scratch_operands = 0 : i64, tpu.core_type = #tpu.core_type<tc>, window_params = [{transform_indices = @transform_0, window_bounds = array<i64: 512, 128>}, {transform_indices = @transform_1, window_bounds = array<i64: 512, 128>}, {pipeline_mode = #tpu.pipeline_mode<synchronous>, transform_indices = @transform_2, window_bounds = array<i64: 128, 128>}, {pipeline_mode = #tpu.pipeline_mode<synchronous>, transform_indices = @transform_3, window_bounds = array<i64: 128, 128>}, {pipeline_mode = #tpu.pipeline_mode<synchronous>, transform_indices = @transform_4, window_bounds = array<i64: 1, 128>}, {transform_indices = @transform_5, window_bounds = array<i64: 512, 128>}]} {
    %c0_i32 = arith.constant 0 : i32
    %0 = arith.cmpi eq, %arg1, %c0_i32 : i32
    %1 = arith.extui %0 : i1 to i32
    %c0_i32_0 = arith.constant 0 : i32
    %2 = arith.cmpi ne, %1, %c0_i32_0 : i32
    scf.if %2 {
      %c0_11 = arith.constant 0 : index
      %c0_12 = arith.constant 0 : index
      %17 = vector.load %arg6[%c0_11, %c0_12] : memref<1x128xf32, #tpu.memory_space<vmem>>, vector<1x128xf32>
      %18 = vector.shape_cast %17 : vector<1x128xf32> to vector<1x128xf32>
      %19 = vector.broadcast %18 : vector<1x128xf32> to vector<512x128xf32>
      %c0_13 = arith.constant 0 : index
      %c0_14 = arith.constant 0 : index
      %20 = vector.load %arg7[%c0_13, %c0_14] : memref<512x128xf32, #tpu.memory_space<vmem>>, vector<512x128xf32>
      tpu.vector_store %arg7[%c0_13, %c0_14], %19 {strides = array<i32>} : memref<512x128xf32, #tpu.memory_space<vmem>>, vector<512x128xf32>,
    } else {
    }
    %c128_i32 = arith.constant 128 : i32
    %3 = arith.muli %arg1, %c128_i32 : i32
    %4 = tpu.assume_multiple %3, 128 : i32
    %5 = arith.index_cast %4 : i32 to index
    %c0 = arith.constant 0 : index
    %6 = vector.load %arg4[%5, %c0] : memref<128x128xbf16, #tpu.memory_space<vmem>>, vector<128x128xbf16>
    %7 = arith.index_cast %4 : i32 to index
    %c0_1 = arith.constant 0 : index
    %8 = vector.load %arg5[%7, %c0_1] : memref<128x128xbf16, #tpu.memory_space<vmem>>, vector<128x128xbf16>
    %c0_2 = arith.constant 0 : index
    %c0_3 = arith.constant 0 : index
    %9 = vector.load %arg7[%c0_2, %c0_3] : memref<512x128xf32, #tpu.memory_space<vmem>>, vector<512x128xf32>
    %c0_4 = arith.constant 0 : index
    %c0_5 = arith.constant 0 : index
    %10 = vector.load %arg2[%c0_4, %c0_5] : memref<512x128xbf16, #tpu.memory_space<vmem>>, vector<512x128xbf16>
    %cst = arith.constant dense<0.000000e+00> : vector<512x128xf32>
    %11 = tpu.matmul %10, %6, %cst {dimension_numbers = #tpu.dot_dimension_numbers<[1], [0], [0], [1], [0, 0, 1, 1], [], []>} : vector<512x128xbf16>, vector<128x128xbf16>, vector<512x128xf32> -> vector<512x128xf32>
    %c0_6 = arith.constant 0 : index
    %c0_7 = arith.constant 0 : index
    %12 = vector.load %arg3[%c0_6, %c0_7] : memref<512x128xbf16, #tpu.memory_space<vmem>>, vector<512x128xbf16>
    %cst_8 = arith.constant dense<0.000000e+00> : vector<512x128xf32>
    %13 = tpu.matmul %12, %8, %cst_8 {dimension_numbers = #tpu.dot_dimension_numbers<[1], [0], [0], [1], [0, 0, 1, 1], [], []>} : vector<512x128xbf16>, vector<128x128xbf16>, vector<512x128xf32> -> vector<512x128xf32>
    %14 = arith.addf %11, %13 : vector<512x128xf32>
    %15 = arith.addf %9, %14 : vector<512x128xf32>
    %c0_9 = arith.constant 0 : index
    %c0_10 = arith.constant 0 : index
    %16 = vector.load %arg7[%c0_9, %c0_10] : memref<512x128xf32, #tpu.memory_space<vmem>>, vector<512x128xf32>
    tpu.vector_store %arg7[%c0_9, %c0_10], %15 {strides = array<i32>} : memref<512x128xf32, #tpu.memory_space<vmem>>, vector<512x128xf32>,
    return
  }
  func.func @transform_0(%arg0: i32, %arg1: i32) -> (i32, i32) {
    %c0_i32 = arith.constant 0 : i32
    return %arg0, %arg1 : i32, i32
  }
  func.func @transform_1(%arg0: i32, %arg1: i32) -> (i32, i32) {
    %c0_i32 = arith.constant 0 : i32
    return %arg0, %arg1 : i32, i32
  }
  func.func @transform_2(%arg0: i32, %arg1: i32) -> (i32, i32) {
    %c0_i32 = arith.constant 0 : i32
    %c0_i32_0 = arith.constant 0 : i32
    %c0_i32_1 = arith.constant 0 : i32
    return %c0_i32, %c0_i32_0 : i32, i32
  }
  func.func @transform_3(%arg0: i32, %arg1: i32) -> (i32, i32) {
    %c0_i32 = arith.constant 0 : i32
    %c0_i32_0 = arith.constant 0 : i32
    %c0_i32_1 = arith.constant 0 : i32
    return %c0_i32, %c0_i32_0 : i32, i32
  }
  func.func @transform_4(%arg0: i32, %arg1: i32) -> (i32, i32) {
    %c0_i32 = arith.constant 0 : i32
    %c0_i32_0 = arith.constant 0 : i32
    %c0_i32_1 = arith.constant 0 : i32
    return %c0_i32, %c0_i32_0 : i32, i32
  }
  func.func @transform_5(%arg0: i32, %arg1: i32) -> (i32, i32) {
    %c0_i32 = arith.constant 0 : i32
    %c0_i32_0 = arith.constant 0 : i32
    return %arg0, %c0_i32 : i32, i32
  }
}

</mosaic_0001>

<llo_original>
// kernel: cconv2d_layer.1
$region0: #{cconv2d_layer.1}
  #allocation0 [shape = 'u32[]', space=smem, size = 0x4, offset = 0x4, fixed_abs, tag = 'smem constant byte address 0x4 - core index']
  #allocation1 [shape = 'u32[144,128]{1,0:T(1,128)}', space=vmem, size = 0x12000, scoped, tag = 'internal scratch']
  %s0 = inlined_call_operand.vmem [shape: bf16[512,128], index: 0, kind: input, shape index: {}]
  %s1 = inlined_call_operand.vmem [shape: bf16[512,128], index: 1, kind: input, shape index: {}]
  %s2 = inlined_call_operand.vmem [shape: bf16[128,128], index: 2, kind: input, shape index: {}]
  %s3 = inlined_call_operand.vmem [shape: bf16[128,128], index: 3, kind: input, shape index: {}]
  %s4 = inlined_call_operand.vmem [shape: f32[1,128], index: 4, kind: input, shape index: {}]
  %s5 = inlined_call_operand.vmem [shape: f32[512,128], index: 5, kind: output, shape index: {}]
  %s6 = sld [smem:[#allocation0]]
  $region34: #{cconv2d_layer.1} parent=0
    _
  %s8 = ssub.s32 1, %s6
  %s9 = scalar_select 0, %s8, %s6
  // Predicated region
  $region2: #{cconv2d_layer.1} parent=0 // pred_check
    _
  $region3: #{cconv2d_layer.1} parent=0 // pred_check_branch
    %11 = sbr.rel (0) target = $region5
  $region4: #{cconv2d_layer.1} parent=0 // pred_region
    _
  $region5: #{cconv2d_layer.1} parent=0 // pred_fallthru
    _
  // Predicated region
  $region6: #{cconv2d_layer.1} parent=0 // pred_check
    _
  $region7: #{cconv2d_layer.1} parent=0 // pred_check_branch
    %13 = sbr.rel (0) target = $region9
  $region8: #{cconv2d_layer.1} parent=0 // pred_region
    _
  $region9: #{cconv2d_layer.1} parent=0 // pred_fallthru
    _
  // Predicated region
  $region10: #{cconv2d_layer.1} parent=0 // pred_check
    _
  $region11: #{cconv2d_layer.1} parent=0 // pred_check_branch
    %15 = sbr.rel (0) target = $region13
  $region12: #{cconv2d_layer.1} parent=0 // pred_region
    _
  $region13: #{cconv2d_layer.1} parent=0 // pred_fallthru
    _
  // Predicated region
  $region14: #{cconv2d_layer.1} parent=0 // pred_check
    _
  $region15: #{cconv2d_layer.1} parent=0 // pred_check_branch
    %17 = sbr.rel (0) target = $region17
  $region16: #{cconv2d_layer.1} parent=0 // pred_region
    _
  $region17: #{cconv2d_layer.1} parent=0 // pred_fallthru
    _
  // Predicated region
  $region18: #{cconv2d_layer.1} parent=0 // pred_check
    _
  $region19: #{cconv2d_layer.1} parent=0 // pred_check_branch
    %19 = sbr.rel (0) target = $region21
  $region20: #{cconv2d_layer.1} parent=0 // pred_region
    _
  $region21: #{cconv2d_layer.1} parent=0 // pred_fallthru
    _
  %p21 = scmp.eq.s32.totalorder 0, 0
  // Predicated region
  $region22: #{cconv2d_layer.1} parent=0 // pred_check
    %p22 = pneg %p21
  $region23: #{cconv2d_layer.1} parent=0 // pred_check_branch
    %24 = sbr.rel (%p22) target = $region25
  $region24: #{cconv2d_layer.1} parent=0 // pred_region
    %v25 = vld [vmem:[%s4] sm:$0x1]
    %v27 = vlaneseq
    %v28 = vshrl.u32 %v27, 7
    %v29 = vsub.s32 0, %v28
    %v30 = vrot.slane %v25, %v29
    %32 = vst [vmem:[%s5] sm:$0xff] %v30
    %33 = vst [vmem:[%s5 + $0x8] sm:$0xff] %v30
    %34 = vst [vmem:[%s5 + $0x10] sm:$0xff] %v30
    %35 = vst [vmem:[%s5 + $0x18] sm:$0xff] %v30
    %36 = vst [vmem:[%s5 + $0x20] sm:$0xff] %v30
    %37 = vst [vmem:[%s5 + $0x28] sm:$0xff] %v30
    %38 = vst [vmem:[%s5 + $0x30] sm:$0xff] %v30
    %39 = vst [vmem:[%s5 + $0x38] sm:$0xff] %v30
    %40 = vst [vmem:[%s5 + $0x40] sm:$0xff] %v30
    %41 = vst [vmem:[%s5 + $0x48] sm:$0xff] %v30
    %42 = vst [vmem:[%s5 + $0x50] sm:$0xff] %v30
    %43 = vst [vmem:[%s5 + $0x58] sm:$0xff] %v30
    %44 = vst [vmem:[%s5 + $0x60] sm:$0xff] %v30
    %45 = vst [vmem:[%s5 + $0x68] sm:$0xff] %v30
    %46 = vst [vmem:[%s5 + $0x70] sm:$0xff] %v30
    %47 = vst [vmem:[%s5 + $0x78] sm:$0xff] %v30
    %48 = vst [vmem:[%s5 + $0x80] sm:$0xff] %v30
    %49 = vst [vmem:[%s5 + $0x88] sm:$0xff] %v30
    %50 = vst [vmem:[%s5 + $0x90] sm:$0xff] %v30
    %51 = vst [vmem:[%s5 + $0x98] sm:$0xff] %v30
    %52 = vst [vmem:[%s5 + $0xa0] sm:$0xff] %v30
    %53 = vst [vmem:[%s5 + $0xa8] sm:$0xff] %v30
    %54 = vst [vmem:[%s5 + $0xb0] sm:$0xff] %v30
    %55 = vst [vmem:[%s5 + $0xb8] sm:$0xff] %v30
    %56 = vst [vmem:[%s5 + $0xc0] sm:$0xff] %v30
    %57 = vst [vmem:[%s5 + $0xc8] sm:$0xff] %v30
    %58 = vst [vmem:[%s5 + $0xd0] sm:$0xff] %v30
    %59 = vst [vmem:[%s5 + $0xd8] sm:$0xff] %v30
    %60 = vst [vmem:[%s5 + $0xe0] sm:$0xff] %v30
    %61 = vst [vmem:[%s5 + $0xe8] sm:$0xff] %v30
    %62 = vst [vmem:[%s5 + $0xf0] sm:$0xff] %v30
    %63 = vst [vmem:[%s5 + $0xf8] sm:$0xff] %v30
    %64 = vst [vmem:[%s5 + $0x100] sm:$0xff] %v30
    %65 = vst [vmem:[%s5 + $0x108] sm:$0xff] %v30
    %66 = vst [vmem:[%s5 + $0x110] sm:$0xff] %v30
    %67 = vst [vmem:[%s5 + $0x118] sm:$0xff] %v30
    %68 = vst [vmem:[%s5 + $0x120] sm:$0xff] %v30
    %69 = vst [vmem:[%s5 + $0x128] sm:$0xff] %v30
    %70 = vst [vmem:[%s5 + $0x130] sm:$0xff] %v30
    %71 = vst [vmem:[%s5 + $0x138] sm:$0xff] %v30
    %72 = vst [vmem:[%s5 + $0x140] sm:$0xff] %v30
    %73 = vst [vmem:[%s5 + $0x148] sm:$0xff] %v30
    %74 = vst [vmem:[%s5 + $0x150] sm:$0xff] %v30
    %75 = vst [vmem:[%s5 + $0x158] sm:$0xff] %v30
    %76 = vst [vmem:[%s5 + $0x160] sm:$0xff] %v30
    %77 = vst [vmem:[%s5 + $0x168] sm:$0xff] %v30
    %78 = vst [vmem:[%s5 + $0x170] sm:$0xff] %v30
    %79 = vst [vmem:[%s5 + $0x178] sm:$0xff] %v30
    %80 = vst [vmem:[%s5 + $0x180] sm:$0xff] %v30
    %81 = vst [vmem:[%s5 + $0x188] sm:$0xff] %v30
    %82 = vst [vmem:[%s5 + $0x190] sm:$0xff] %v30
    %83 = vst [vmem:[%s5 + $0x198] sm:$0xff] %v30
    %84 = vst [vmem:[%s5 + $0x1a0] sm:$0xff] %v30
    %85 = vst [vmem:[%s5 + $0x1a8] sm:$0xff] %v30
    %86 = vst [vmem:[%s5 + $0x1b0] sm:$0xff] %v30
    %87 = vst [vmem:[%s5 + $0x1b8] sm:$0xff] %v30
    %88 = vst [vmem:[%s5 + $0x1c0] sm:$0xff] %v30
    %89 = vst [vmem:[%s5 + $0x1c8] sm:$0xff] %v30
    %90 = vst [vmem:[%s5 + $0x1d0] sm:$0xff] %v30
    %91 = vst [vmem:[%s5 + $0x1d8] sm:$0xff] %v30
    %92 = vst [vmem:[%s5 + $0x1e0] sm:$0xff] %v30
    %93 = vst [vmem:[%s5 + $0x1e8] sm:$0xff] %v30
    %94 = vst [vmem:[%s5 + $0x1f0] sm:$0xff] %v30
    %95 = vst [vmem:[%s5 + $0x1f8] sm:$0xff] %v30
  $region25: #{cconv2d_layer.1} parent=0 // pred_fallthru
    _
  %s96 = smul.u32 0, 128
  %s97 = sshra.s32 %s96, 3
  %s98 = sand.u32 %s96, 7
  %s99 = smul.addr %s97, 4
  %s100 = scalar_lea.vmem %s2, %s99
  %v101 = vld [vmem:[%s100] sm:$0xf]
  %v102 = vld [vmem:[%s100 + $0x4] sm:$0xf]
  %v103 = vld [vmem:[%s100 + $0x8] sm:$0xf]
  %v104 = vld [vmem:[%s100 + $0xc] sm:$0xf]
  %v105 = vld [vmem:[%s100 + $0x10] sm:$0xf]
  %v106 = vld [vmem:[%s100 + $0x14] sm:$0xf]
  %v107 = vld [vmem:[%s100 + $0x18] sm:$0xf]
  %v108 = vld [vmem:[%s100 + $0x1c] sm:$0xf]
  %v109 = vld [vmem:[%s100 + $0x20] sm:$0xf]
  %v110 = vld [vmem:[%s100 + $0x24] sm:$0xf]
  %v111 = vld [vmem:[%s100 + $0x28] sm:$0xf]
  %v112 = vld [vmem:[%s100 + $0x2c] sm:$0xf]
  %v113 = vld [vmem:[%s100 + $0x30] sm:$0xf]
  %v114 = vld [vmem:[%s100 + $0x34] sm:$0xf]
  %v115 = vld [vmem:[%s100 + $0x38] sm:$0xf]
  %v116 = vld [vmem:[%s100 + $0x3c] sm:$0xf]
  %s117 = smul.addr %s97, 4
  %s118 = scalar_lea.vmem %s3, %s117
  %v119 = vld [vmem:[%s118] sm:$0xf]
  %v120 = vld [vmem:[%s118 + $0x4] sm:$0xf]
  %v121 = vld [vmem:[%s118 + $0x8] sm:$0xf]
  %v122 = vld [vmem:[%s118 + $0xc] sm:$0xf]
  %v123 = vld [vmem:[%s118 + $0x10] sm:$0xf]
  %v124 = vld [vmem:[%s118 + $0x14] sm:$0xf]
  %v125 = vld [vmem:[%s118 + $0x18] sm:$0xf]
  %v126 = vld [vmem:[%s118 + $0x1c] sm:$0xf]
  %v127 = vld [vmem:[%s118 + $0x20] sm:$0xf]
  %v128 = vld [vmem:[%s118 + $0x24] sm:$0xf]
  %v129 = vld [vmem:[%s118 + $0x28] sm:$0xf]
  %v130 = vld [vmem:[%s118 + $0x2c] sm:$0xf]
  %v131 = vld [vmem:[%s118 + $0x30] sm:$0xf]
  %v132 = vld [vmem:[%s118 + $0x34] sm:$0xf]
  %v133 = vld [vmem:[%s118 + $0x38] sm:$0xf]
  %v134 = vld [vmem:[%s118 + $0x3c] sm:$0xf]
  %v135 = vld [vmem:[%s5] sm:$0xff]
  %v136 = vld [vmem:[%s5 + $0x8] sm:$0xff]
  %v137 = vld [vmem:[%s5 + $0x10] sm:$0xff]
  %v138 = vld [vmem:[%s5 + $0x18] sm:$0xff]
  %v139 = vld [vmem:[%s5 + $0x20] sm:$0xff]
  %v140 = vld [vmem:[%s5 + $0x28] sm:$0xff]
  %v141 = vld [vmem:[%s5 + $0x30] sm:$0xff]
  %v142 = vld [vmem:[%s5 + $0x38] sm:$0xff]
  %v143 = vld [vmem:[%s5 + $0x40] sm:$0xff]
  %v144 = vld [vmem:[%s5 + $0x48] sm:$0xff]
  %v145 = vld [vmem:[%s5 + $0x50] sm:$0xff]
  %v146 = vld [vmem:[%s5 + $0x58] sm:$0xff]
  %v147 = vld [vmem:[%s5 + $0x60] sm:$0xff]
  %v148 = vld [vmem:[%s5 + $0x68] sm:$0xff]
  %v149 = vld [vmem:[%s5 + $0x70] sm:$0xff]
  %v150 = vld [vmem:[%s5 + $0x78] sm:$0xff]
  %v151 = vld [vmem:[%s5 + $0x80] sm:$0xff]
  %v152 = vld [vmem:[%s5 + $0x88] sm:$0xff]
  %v153 = vld [vmem:[%s5 + $0x90] sm:$0xff]
  %v154 = vld [vmem:[%s5 + $0x98] sm:$0xff]
  %v155 = vld [vmem:[%s5 + $0xa0] sm:$0xff]
  %v156 = vld [vmem:[%s5 + $0xa8] sm:$0xff]
  %v157 = vld [vmem:[%s5 + $0xb0] sm:$0xff]
  %v158 = vld [vmem:[%s5 + $0xb8] sm:$0xff]
  %v159 = vld [vmem:[%s5 + $0xc0] sm:$0xff]
  %v160 = vld [vmem:[%s5 + $0xc8] sm:$0xff]
  %v161 = vld [vmem:[%s5 + $0xd0] sm:$0xff]
  %v162 = vld [vmem:[%s5 + $0xd8] sm:$0xff]
  %v163 = vld [vmem:[%s5 + $0xe0] sm:$0xff]
  %v164 = vld [vmem:[%s5 + $0xe8] sm:$0xff]
  %v165 = vld [vmem:[%s5 + $0xf0] sm:$0xff]
  %v166 = vld [vmem:[%s5 + $0xf8] sm:$0xff]
  %v167 = vld [vmem:[%s5 + $0x100] sm:$0xff]
  %v168 = vld [vmem:[%s5 + $0x108] sm:$0xff]
  %v169 = vld [vmem:[%s5 + $0x110] sm:$0xff]
  %v170 = vld [vmem:[%s5 + $0x118] sm:$0xff]
  %v171 = vld [vmem:[%s5 + $0x120] sm:$0xff]
  %v172 = vld [vmem:[%s5 + $0x128] sm:$0xff]
  %v173 = vld [vmem:[%s5 + $0x130] sm:$0xff]
  %v174 = vld [vmem:[%s5 + $0x138] sm:$0xff]
  %v175 = vld [vmem:[%s5 + $0x140] sm:$0xff]
  %v176 = vld [vmem:[%s5 + $0x148] sm:$0xff]
  %v177 = vld [vmem:[%s5 + $0x150] sm:$0xff]
  %v178 = vld [vmem:[%s5 + $0x158] sm:$0xff]
  %v179 = vld [vmem:[%s5 + $0x160] sm:$0xff]
  %v180 = vld [vmem:[%s5 + $0x168] sm:$0xff]
  %v181 = vld [vmem:[%s5 + $0x170] sm:$0xff]
  %v182 = vld [vmem:[%s5 + $0x178] sm:$0xff]
  %v183 = vld [vmem:[%s5 + $0x180] sm:$0xff]
  %v184 = vld [vmem:[%s5 + $0x188] sm:$0xff]
  %v185 = vld [vmem:[%s5 + $0x190] sm:$0xff]
  %v186 = vld [vmem:[%s5 + $0x198] sm:$0xff]
  %v187 = vld [vmem:[%s5 + $0x1a0] sm:$0xff]
  %v188 = vld [vmem:[%s5 + $0x1a8] sm:$0xff]
  %v189 = vld [vmem:[%s5 + $0x1b0] sm:$0xff]
  %v190 = vld [vmem:[%s5 + $0x1b8] sm:$0xff]
  %v191 = vld [vmem:[%s5 + $0x1c0] sm:$0xff]
  %v192 = vld [vmem:[%s5 + $0x1c8] sm:$0xff]
  %v193 = vld [vmem:[%s5 + $0x1d0] sm:$0xff]
  %v194 = vld [vmem:[%s5 + $0x1d8] sm:$0xff]
  %v195 = vld [vmem:[%s5 + $0x1e0] sm:$0xff]
  %v196 = vld [vmem:[%s5 + $0x1e8] sm:$0xff]
  %v197 = vld [vmem:[%s5 + $0x1f0] sm:$0xff]
  %v198 = vld [vmem:[%s5 + $0x1f8] sm:$0xff]
  %v199 = vld [vmem:[%s0] sm:$0xf]
  %v200 = vld [vmem:[%s0 + $0x4] sm:$0xf]
  %v201 = vld [vmem:[%s0 + $0x8] sm:$0xf]
  %v202 = vld [vmem:[%s0 + $0xc] sm:$0xf]
  %v203 = vld [vmem:[%s0 + $0x10] sm:$0xf]
  %v204 = vld [vmem:[%s0 + $0x14] sm:$0xf]
  %v205 = vld [vmem:[%s0 + $0x18] sm:$0xf]
  %v206 = vld [vmem:[%s0 + $0x1c] sm:$0xf]
  %v207 = vld [vmem:[%s0 + $0x20] sm:$0xf]
  %v208 = vld [vmem:[%s0 + $0x24] sm:$0xf]
  %v209 = vld [vmem:[%s0 + $0x28] sm:$0xf]
  %v210 = vld [vmem:[%s0 + $0x2c] sm:$0xf]
  %v211 = vld [vmem:[%s0 + $0x30] sm:$0xf]
  %v212 = vld [vmem:[%s0 + $0x34] sm:$0xf]
  %v213 = vld [vmem:[%s0 + $0x38] sm:$0xf]
  %v214 = vld [vmem:[%s0 + $0x3c] sm:$0xf]
  %v215 = vld [vmem:[%s0 + $0x40] sm:$0xf]
  %v216 = vld [vmem:[%s0 + $0x44] sm:$0xf]
  %v217 = vld [vmem:[%s0 + $0x48] sm:$0xf]
  %v218 = vld [vmem:[%s0 + $0x4c] sm:$0xf]
  %v219 = vld [vmem:[%s0 + $0x50] sm:$0xf]
  %v220 = vld [vmem:[%s0 + $0x54] sm:$0xf]
  %v221 = vld [vmem:[%s0 + $0x58] sm:$0xf]
  %v222 = vld [vmem:[%s0 + $0x5c] sm:$0xf]
  %v223 = vld [vmem:[%s0 + $0x60] sm:$0xf]
  %v224 = vld [vmem:[%s0 + $0x64] sm:$0xf]
  %v225 = vld [vmem:[%s0 + $0x68] sm:$0xf]
  %v226 = vld [vmem:[%s0 + $0x6c] sm:$0xf]
  %v227 = vld [vmem:[%s0 + $0x70] sm:$0xf]
  %v228 = vld [vmem:[%s0 + $0x74] sm:$0xf]
  %v229 = vld [vmem:[%s0 + $0x78] sm:$0xf]
  %v230 = vld [vmem:[%s0 + $0x7c] sm:$0xf]
  %v231 = vld [vmem:[%s0 + $0x80] sm:$0xf]
  %v232 = vld [vmem:[%s0 + $0x84] sm:$0xf]
  %v233 = vld [vmem:[%s0 + $0x88] sm:$0xf]
  %v234 = vld [vmem:[%s0 + $0x8c] sm:$0xf]
  %v235 = vld [vmem:[%s0 + $0x90] sm:$0xf]
  %v236 = vld [vmem:[%s0 + $0x94] sm:$0xf]
  %v237 = vld [vmem:[%s0 + $0x98] sm:$0xf]
  %v238 = vld [vmem:[%s0 + $0x9c] sm:$0xf]
  %v239 = vld [vmem:[%s0 + $0xa0] sm:$0xf]
  %v240 = vld [vmem:[%s0 + $0xa4] sm:$0xf]
  %v241 = vld [vmem:[%s0 + $0xa8] sm:$0xf]
  %v242 = vld [vmem:[%s0 + $0xac] sm:$0xf]
  %v243 = vld [vmem:[%s0 + $0xb0] sm:$0xf]
  %v244 = vld [vmem:[%s0 + $0xb4] sm:$0xf]
  %v245 = vld [vmem:[%s0 + $0xb8] sm:$0xf]
  %v246 = vld [vmem:[%s0 + $0xbc] sm:$0xf]
  %v247 = vld [vmem:[%s0 + $0xc0] sm:$0xf]
  %v248 = vld [vmem:[%s0 + $0xc4] sm:$0xf]
  %v249 = vld [vmem:[%s0 + $0xc8] sm:$0xf]
  %v250 = vld [vmem:[%s0 + $0xcc] sm:$0xf]
  %v251 = vld [vmem:[%s0 + $0xd0] sm:$0xf]
  %v252 = vld [vmem:[%s0 + $0xd4] sm:$0xf]
  %v253 = vld [vmem:[%s0 + $0xd8] sm:$0xf]
  %v254 = vld [vmem:[%s0 + $0xdc] sm:$0xf]
  %v255 = vld [vmem:[%s0 + $0xe0] sm:$0xf]
  %v256 = vld [vmem:[%s0 + $0xe4] sm:$0xf]
  %v257 = vld [vmem:[%s0 + $0xe8] sm:$0xf]
  %v258 = vld [vmem:[%s0 + $0xec] sm:$0xf]
  %v259 = vld [vmem:[%s0 + $0xf0] sm:$0xf]
  %v260 = vld [vmem:[%s0 + $0xf4] sm:$0xf]
  %v261 = vld [vmem:[%s0 + $0xf8] sm:$0xf]
  %v262 = vld [vmem:[%s0 + $0xfc] sm:$0xf]
  %v263 = vld [vmem:[%s1] sm:$0xf]
  %v264 = vld [vmem:[%s1 + $0x4] sm:$0xf]
  %v265 = vld [vmem:[%s1 + $0x8] sm:$0xf]
  %v266 = vld [vmem:[%s1 + $0xc] sm:$0xf]
  %v267 = vld [vmem:[%s1 + $0x10] sm:$0xf]
  %v268 = vld [vmem:[%s1 + $0x14] sm:$0xf]
  %v269 = vld [vmem:[%s1 + $0x18] sm:$0xf]
  %v270 = vld [vmem:[%s1 + $0x1c] sm:$0xf]
  %v271 = vld [vmem:[%s1 + $0x20] sm:$0xf]
  %v272 = vld [vmem:[%s1 + $0x24] sm:$0xf]
  %v273 = vld [vmem:[%s1 + $0x28] sm:$0xf]
  %v274 = vld [vmem:[%s1 + $0x2c] sm:$0xf]
  %v275 = vld [vmem:[%s1 + $0x30] sm:$0xf]
  %v276 = vld [vmem:[%s1 + $0x34] sm:$0xf]
  %v277 = vld [vmem:[%s1 + $0x38] sm:$0xf]
  %v278 = vld [vmem:[%s1 + $0x3c] sm:$0xf]
  %v279 = vld [vmem:[%s1 + $0x40] sm:$0xf]
  %v280 = vld [vmem:[%s1 + $0x44] sm:$0xf]
  %v281 = vld [vmem:[%s1 + $0x48] sm:$0xf]
  %v282 = vld [vmem:[%s1 + $0x4c] sm:$0xf]
  %v283 = vld [vmem:[%s1 + $0x50] sm:$0xf]
  %v284 = vld [vmem:[%s1 + $0x54] sm:$0xf]
  %v285 = vld [vmem:[%s1 + $0x58] sm:$0xf]
  %v286 = vld [vmem:[%s1 + $0x5c] sm:$0xf]
  %v287 = vld [vmem:[%s1 + $0x60] sm:$0xf]
  %v288 = vld [vmem:[%s1 + $0x64] sm:$0xf]
  %v289 = vld [vmem:[%s1 + $0x68] sm:$0xf]
  %v290 = vld [vmem:[%s1 + $0x6c] sm:$0xf]
  %v291 = vld [vmem:[%s1 + $0x70] sm:$0xf]
  %v292 = vld [vmem:[%s1 + $0x74] sm:$0xf]
  %v293 = vld [vmem:[%s1 + $0x78] sm:$0xf]
  %v294 = vld [vmem:[%s1 + $0x7c] sm:$0xf]
  %v295 = vld [vmem:[%s1 + $0x80] sm:$0xf]
  %v296 = vld [vmem:[%s1 + $0x84] sm:$0xf]
  %v297 = vld [vmem:[%s1 + $0x88] sm:$0xf]
  %v298 = vld [vmem:[%s1 + $0x8c] sm:$0xf]
  %v299 = vld [vmem:[%s1 + $0x90] sm:$0xf]
  %v300 = vld [vmem:[%s1 + $0x94] sm:$0xf]
  %v301 = vld [vmem:[%s1 + $0x98] sm:$0xf]
  %v302 = vld [vmem:[%s1 + $0x9c] sm:$0xf]
  %v303 = vld [vmem:[%s1 + $0xa0] sm:$0xf]
  %v304 = vld [vmem:[%s1 + $0xa4] sm:$0xf]
  %v305 = vld [vmem:[%s1 + $0xa8] sm:$0xf]
  %v306 = vld [vmem:[%s1 + $0xac] sm:$0xf]
  %v307 = vld [vmem:[%s1 + $0xb0] sm:$0xf]
  %v308 = vld [vmem:[%s1 + $0xb4] sm:$0xf]
  %v309 = vld [vmem:[%s1 + $0xb8] sm:$0xf]
  %v310 = vld [vmem:[%s1 + $0xbc] sm:$0xf]
  %v311 = vld [vmem:[%s1 + $0xc0] sm:$0xf]
  %v312 = vld [vmem:[%s1 + $0xc4] sm:$0xf]
  %v313 = vld [vmem:[%s1 + $0xc8] sm:$0xf]
  %v314 = vld [vmem:[%s1 + $0xcc] sm:$0xf]
  %v315 = vld [vmem:[%s1 + $0xd0] sm:$0xf]
  %v316 = vld [vmem:[%s1 + $0xd4] sm:$0xf]
  %v317 = vld [vmem:[%s1 + $0xd8] sm:$0xf]
  %v318 = vld [vmem:[%s1 + $0xdc] sm:$0xf]
  %v319 = vld [vmem:[%s1 + $0xe0] sm:$0xf]
  %v320 = vld [vmem:[%s1 + $0xe4] sm:$0xf]
  %v321 = vld [vmem:[%s1 + $0xe8] sm:$0xf]
  %v322 = vld [vmem:[%s1 + $0xec] sm:$0xf]
  %v323 = vld [vmem:[%s1 + $0xf0] sm:$0xf]
  %v324 = vld [vmem:[%s1 + $0xf4] sm:$0xf]
  %v325 = vld [vmem:[%s1 + $0xf8] sm:$0xf]
  %v326 = vld [vmem:[%s1 + $0xfc] sm:$0xf]
  %v391 = vunpack.c.l.b16 %v263
  %v392 = vunpack.c.l.b16 %v264
  %v393 = vunpack.c.l.b16 %v265
  %v394 = vunpack.c.l.b16 %v266
  %v395 = vunpack.c.l.b16 %v267
  %v396 = vunpack.c.l.b16 %v268
  %v397 = vunpack.c.l.b16 %v269
  %v398 = vunpack.c.l.b16 %v270
  %v399 = vunpack.c.l.b16 %v271
  %v400 = vunpack.c.l.b16 %v272
  %v401 = vunpack.c.l.b16 %v273
  %v402 = vunpack.c.l.b16 %v274
  %v403 = vunpack.c.l.b16 %v275
  %v404 = vunpack.c.l.b16 %v276
  %v405 = vunpack.c.l.b16 %v277
  %v406 = vunpack.c.l.b16 %v278
  %v407 = vunpack.c.l.b16 %v279
  %v408 = vunpack.c.l.b16 %v280
  %v409 = vunpack.c.l.b16 %v281
  %v410 = vunpack.c.l.b16 %v282
  %v411 = vunpack.c.l.b16 %v283
  %v412 = vunpack.c.l.b16 %v284
  %v413 = vunpack.c.l.b16 %v285
  %v414 = vunpack.c.l.b16 %v286
  %v415 = vunpack.c.l.b16 %v287
  %v416 = vunpack.c.l.b16 %v288
  %v417 = vunpack.c.l.b16 %v289
  %v418 = vunpack.c.l.b16 %v290
  %v419 = vunpack.c.l.b16 %v291
  %v420 = vunpack.c.l.b16 %v292
  %v421 = vunpack.c.l.b16 %v293
  %v422 = vunpack.c.l.b16 %v294
  %v423 = vunpack.c.l.b16 %v295
  %v424 = vunpack.c.l.b16 %v296
  %v425 = vunpack.c.l.b16 %v297
  %v426 = vunpack.c.l.b16 %v298
  %v427 = vunpack.c.l.b16 %v299
  %v428 = vunpack.c.l.b16 %v300
  %v429 = vunpack.c.l.b16 %v301
  %v430 = vunpack.c.l.b16 %v302
  %v431 = vunpack.c.l.b16 %v303
  %v432 = vunpack.c.l.b16 %v304
  %v433 = vunpack.c.l.b16 %v305
  %v434 = vunpack.c.l.b16 %v306
  %v435 = vunpack.c.l.b16 %v307
  %v436 = vunpack.c.l.b16 %v308
  %v437 = vunpack.c.l.b16 %v309
  %v438 = vunpack.c.l.b16 %v310
  %v439 = vunpack.c.l.b16 %v311
  %v440 = vunpack.c.l.b16 %v312
  %v441 = vunpack.c.l.b16 %v313
  %v442 = vunpack.c.l.b16 %v314
  %v443 = vunpack.c.l.b16 %v315
  %v444 = vunpack.c.l.b16 %v316
  %v445 = vunpack.c.l.b16 %v317
  %v446 = vunpack.c.l.b16 %v318
  %v447 = vunpack.c.l.b16 %v319
  %v448 = vunpack.c.l.b16 %v320
  %v449 = vunpack.c.l.b16 %v321
  %v450 = vunpack.c.l.b16 %v322
  %v451 = vunpack.c.l.b16 %v323
  %v452 = vunpack.c.l.b16 %v324
  %v453 = vunpack.c.l.b16 %v325
  %v454 = vunpack.c.l.b16 %v326
  %v455 = vpack.c.b16 %v392, %v391
  %v456 = vpack.c.b16 %v394, %v393
  %v457 = vpack.c.b16 %v396, %v395
  %v458 = vpack.c.b16 %v398, %v397
  %v459 = vpack.c.b16 %v400, %v399
  %v460 = vpack.c.b16 %v402, %v401
  %v461 = vpack.c.b16 %v404, %v403
  %v462 = vpack.c.b16 %v406, %v405
  %v463 = vpack.c.b16 %v408, %v407
  %v464 = vpack.c.b16 %v410, %v409
  %v465 = vpack.c.b16 %v412, %v411
  %v466 = vpack.c.b16 %v414, %v413
  %v467 = vpack.c.b16 %v416, %v415
  %v468 = vpack.c.b16 %v418, %v417
  %v469 = vpack.c.b16 %v420, %v419
  %v470 = vpack.c.b16 %v422, %v421
  %v471 = vpack.c.b16 %v424, %v423
  %v472 = vpack.c.b16 %v426, %v425
  %v473 = vpack.c.b16 %v428, %v427
  %v474 = vpack.c.b16 %v430, %v429
  %v475 = vpack.c.b16 %v432, %v431
  %v476 = vpack.c.b16 %v434, %v433
  %v477 = vpack.c.b16 %v436, %v435
  %v478 = vpack.c.b16 %v438, %v437
  %v479 = vpack.c.b16 %v440, %v439
  %v480 = vpack.c.b16 %v442, %v441
  %v481 = vpack.c.b16 %v444, %v443
  %v482 = vpack.c.b16 %v446, %v445
  %v483 = vpack.c.b16 %v448, %v447
  %v484 = vpack.c.b16 %v450, %v449
  %v485 = vpack.c.b16 %v452, %v451
  %v486 = vpack.c.b16 %v454, %v453
  %v535 = vunpack.c.l.b16 %v119
  %v536 = vunpack.c.l.b16 %v120
  %v537 = vunpack.c.l.b16 %v121
  %v538 = vunpack.c.l.b16 %v122
  %v539 = vunpack.c.l.b16 %v123
  %v540 = vunpack.c.l.b16 %v124
  %v541 = vunpack.c.l.b16 %v125
  %v542 = vunpack.c.l.b16 %v126
  %v543 = vunpack.c.l.b16 %v127
  %v544 = vunpack.c.l.b16 %v128
  %v545 = vunpack.c.l.b16 %v129
  %v546 = vunpack.c.l.b16 %v130
  %v547 = vunpack.c.l.b16 %v131
  %v548 = vunpack.c.l.b16 %v132
  %v549 = vunpack.c.l.b16 %v133
  %v550 = vunpack.c.l.b16 %v134
  %v551 = vpack.c.b16 %v536, %v535
  %v552 = vpack.c.b16 %v538, %v537
  %v553 = vpack.c.b16 %v540, %v539
  %v554 = vpack.c.b16 %v542, %v541
  %v555 = vpack.c.b16 %v544, %v543
  %v556 = vpack.c.b16 %v546, %v545
  %v557 = vpack.c.b16 %v548, %v547
  %v558 = vpack.c.b16 %v550, %v549
  %567 = vmatprep.subr.bf16.mxu0 0
  %568 = vmatpush1.bf16.msra.mxu0 %v551
  %569 = vmatprep.subr.bf16.mxu0 0
  %570 = vmatpush1.bf16.msra.mxu0 %v552
  %571 = vmatprep.subr.bf16.mxu0 0
  %572 = vmatpush1.bf16.msra.mxu0 %v553
  %573 = vmatprep.subr.bf16.mxu0 0
  %574 = vmatpush1.bf16.msra.mxu0 %v554
  %575 = vmatprep.subr.bf16.mxu0 0
  %576 = vmatpush1.bf16.msra.mxu0 %v555
  %577 = vmatprep.subr.bf16.mxu0 0
  %578 = vmatpush1.bf16.msra.mxu0 %v556
  %579 = vmatprep.subr.bf16.mxu0 0
  %580 = vmatpush1.bf16.msra.mxu0 %v557
  %581 = vmatprep.subr.bf16.mxu0 0
  %582 = vmatpush1.bf16.msra.mxu0 %v558
  %583 = vmatprep.subr.bf16.mxu0 0
  %584 = vmatpush1.bf16.msra.mxu0 0
  %585 = vmatprep.subr.bf16.mxu0 0
  %586 = vmatpush1.bf16.msra.mxu0 0
  %587 = vmatprep.subr.bf16.mxu0 0
  %588 = vmatpush1.bf16.msra.mxu0 0
  %589 = vmatprep.subr.bf16.mxu0 0
  %590 = vmatpush1.bf16.msra.mxu0 0
  %591 = vmatprep.subr.bf16.mxu0 0
  %592 = vmatpush1.bf16.msra.mxu0 0
  %593 = vmatprep.subr.bf16.mxu0 0
  %594 = vmatpush1.bf16.msra.mxu0 0
  %595 = vmatprep.subr.bf16.mxu0 0
  %596 = vmatpush1.bf16.msra.mxu0 0
  %597 = vmatprep.subr.bf16.mxu0 0
  %598 = vmatpush1.bf16.msra.mxu0 0
  %599 = vmatprep.mubr.bf16.mxu0 0
  %600 = vmatmul.mubr.bf16.gmra.mrb[0].mxu0 %v455
  %v601 = vpop.f32.mrb[0].mxu0
  %v602 = vadd.f32 0.0, %v601
  %v603 = vpop.f32.mrb[0].mxu0
  %v604 = vpop.f32.mrb[0].mxu0
  %v605 = vadd.f32 0.0, %v604
  %v606 = vpop.f32.mrb[0].mxu0
  %607 = vmatprep.mubr.bf16.mxu0 0
  %608 = vmatmul.mubr.bf16.gmra.mrb[0].mxu0 %v456
  %v609 = vpop.f32.mrb[0].mxu0
  %v610 = vadd.f32 0.0, %v609
  %v611 = vpop.f32.mrb[0].mxu0
  %v612 = vpop.f32.mrb[0].mxu0
  %v613 = vadd.f32 0.0, %v612
  %v614 = vpop.f32.mrb[0].mxu0
  %615 = vmatprep.mubr.bf16.mxu0 0
  %616 = vmatmul.mubr.bf16.gmra.mrb[0].mxu0 %v457
  %v617 = vpop.f32.mrb[0].mxu0
  %v618 = vadd.f32 0.0, %v617
  %v619 = vpop.f32.mrb[0].mxu0
  %v620 = vpop.f32.mrb[0].mxu0
  %v621 = vadd.f32 0.0, %v620
  %v622 = vpop.f32.mrb[0].mxu0
  %623 = vmatprep.mubr.bf16.mxu0 0
  %624 = vmatmul.mubr.bf16.gmra.mrb[0].mxu0 %v458
  %v625 = vpop.f32.mrb[0].mxu0
  %v626 = vadd.f32 0.0, %v625
  %v627 = vpop.f32.mrb[0].mxu0
  %v628 = vpop.f32.mrb[0].mxu0
  %v629 = vadd.f32 0.0, %v628
  %v630 = vpop.f32.mrb[0].mxu0
  %631 = vmatprep.mubr.bf16.mxu0 0
  %632 = vmatmul.mubr.bf16.gmra.mrb[0].mxu0 %v459
  %v633 = vpop.f32.mrb[0].mxu0
  %v634 = vadd.f32 0.0, %v633
  %v635 = vpop.f32.mrb[0].mxu0
  %v636 = vpop.f32.mrb[0].mxu0
  %v637 = vadd.f32 0.0, %v636
  %v638 = vpop.f32.mrb[0].mxu0
  %639 = vmatprep.mubr.bf16.mxu0 0
  %640 = vmatmul.mubr.bf16.gmra.mrb[0].mxu0 %v460
  %v641 = vpop.f32.mrb[0].mxu0
  %v642 = vadd.f32 0.0, %v641
  %v643 = vpop.f32.mrb[0].mxu0
  %v644 = vpop.f32.mrb[0].mxu0
  %v645 = vadd.f32 0.0, %v644
  %v646 = vpop.f32.mrb[0].mxu0
  %647 = vmatprep.mubr.bf16.mxu0 0
  %648 = vmatmul.mubr.bf16.gmra.mrb[0].mxu0 %v461
  %v649 = vpop.f32.mrb[0].mxu0
  %v650 = vadd.f32 0.0, %v649
  %v651 = vpop.f32.mrb[0].mxu0
  %v652 = vpop.f32.mrb[0].mxu0
  %v653 = vadd.f32 0.0, %v652
  %v654 = vpop.f32.mrb[0].mxu0
  %655 = vmatprep.mubr.bf16.mxu0 0
  %656 = vmatmul.mubr.bf16.gmra.mrb[0].mxu0 %v462
  %v657 = vpop.f32.mrb[0].mxu0
  %v658 = vadd.f32 0.0, %v657
  %v659 = vpop.f32.mrb[0].mxu0
  %v660 = vpop.f32.mrb[0].mxu0
  %v661 = vadd.f32 0.0, %v660
  %v662 = vpop.f32.mrb[0].mxu0
  %663 = vmatprep.mubr.bf16.mxu0 0
  %664 = vmatmul.mubr.bf16.gmra.mrb[0].mxu0 %v463
  %v665 = vpop.f32.mrb[0].mxu0
  %v666 = vadd.f32 0.0, %v665
  %v667 = vpop.f32.mrb[0].mxu0
  %v668 = vpop.f32.mrb[0].mxu0
  %v669 = vadd.f32 0.0, %v668
  %v670 = vpop.f32.mrb[0].mxu0
  %671 = vmatprep.mubr.bf16.mxu0 0
  %672 = vmatmul.mubr.bf16.gmra.mrb[0].mxu0 %v464
  %v673 = vpop.f32.mrb[0].mxu0
  %v674 = vadd.f32 0.0, %v673
  %v675 = vpop.f32.mrb[0].mxu0
  %v676 = vpop.f32.mrb[0].mxu0
  %v677 = vadd.f32 0.0, %v676
  %v678 = vpop.f32.mrb[0].mxu0
  %679 = vmatprep.mubr.bf16.mxu0 0
  %680 = vmatmul.mubr.bf16.gmra.mrb[0].mxu0 %v465
  %v681 = vpop.f32.mrb[0].mxu0
  %v682 = vadd.f32 0.0, %v681
  %v683 = vpop.f32.mrb[0].mxu0
  %v684 = vpop.f32.mrb[0].mxu0
  %v685 = vadd.f32 0.0, %v684
  %v686 = vpop.f32.mrb[0].mxu0
  %687 = vmatprep.mubr.bf16.mxu0 0
  %688 = vmatmul.mubr.bf16.gmra.mrb[0].mxu0 %v466
  %v689 = vpop.f32.mrb[0].mxu0
  %v690 = vadd.f32 0.0, %v689
  %v691 = vpop.f32.mrb[0].mxu0
  %v692 = vpop.f32.mrb[0].mxu0
  %v693 = vadd.f32 0.0, %v692
  %v694 = vpop.f32.mrb[0].mxu0
  %695 = vmatprep.mubr.bf16.mxu0 0
  %696 = vmatmul.mubr.bf16.gmra.mrb[0].mxu0 %v467
  %v697 = vpop.f32.mrb[0].mxu0
  %v698 = vadd.f32 0.0, %v697
  %v699 = vpop.f32.mrb[0].mxu0
  %v700 = vpop.f32.mrb[0].mxu0
  %v701 = vadd.f32 0.0, %v700
  %v702 = vpop.f32.mrb[0].mxu0
  %703 = vmatprep.mubr.bf16.mxu0 0
  %704 = vmatmul.mubr.bf16.gmra.mrb[0].mxu0 %v468
  %v705 = vpop.f32.mrb[0].mxu0
  %v706 = vadd.f32 0.0, %v705
  %v707 = vpop.f32.mrb[0].mxu0
  %v708 = vpop.f32.mrb[0].mxu0
  %v709 = vadd.f32 0.0, %v708
  %v710 = vpop.f32.mrb[0].mxu0
  %711 = vmatprep.mubr.bf16.mxu0 0
  %712 = vmatmul.mubr.bf16.gmra.mrb[0].mxu0 %v469
  %v713 = vpop.f32.mrb[0].mxu0
  %v714 = vadd.f32 0.0, %v713
  %v715 = vpop.f32.mrb[0].mxu0
  %v716 = vpop.f32.mrb[0].mxu0
  %v717 = vadd.f32 0.0, %v716
  %v718 = vpop.f32.mrb[0].mxu0
  %719 = vmatprep.mubr.bf16.mxu0 0
  %720 = vmatmul.mubr.bf16.gmra.mrb[0].mxu0 %v470
  %v721 = vpop.f32.mrb[0].mxu0
  %v722 = vadd.f32 0.0, %v721
  %v723 = vpop.f32.mrb[0].mxu0
  %v724 = vpop.f32.mrb[0].mxu0
  %v725 = vadd.f32 0.0, %v724
  %v726 = vpop.f32.mrb[0].mxu0
  %727 = vmatprep.mubr.bf16.mxu0 0
  %728 = vmatmul.mubr.bf16.gmra.mrb[0].mxu0 %v471
  %v729 = vpop.f32.mrb[0].mxu0
  %v730 = vadd.f32 0.0, %v729
  %v731 = vpop.f32.mrb[0].mxu0
  %v732 = vpop.f32.mrb[0].mxu0
  %v733 = vadd.f32 0.0, %v732
  %v734 = vpop.f32.mrb[0].mxu0
  %735 = vmatprep.mubr.bf16.mxu0 0
  %736 = vmatmul.mubr.bf16.gmra.mrb[0].mxu0 %v472
  %v737 = vpop.f32.mrb[0].mxu0
  %v738 = vadd.f32 0.0, %v737
  %v739 = vpop.f32.mrb[0].mxu0
  %v740 = vpop.f32.mrb[0].mxu0
  %v741 = vadd.f32 0.0, %v740
  %v742 = vpop.f32.mrb[0].mxu0
  %743 = vmatprep.mubr.bf16.mxu0 0
  %744 = vmatmul.mubr.bf16.gmra.mrb[0].mxu0 %v473
  %v745 = vpop.f32.mrb[0].mxu0
  %v746 = vadd.f32 0.0, %v745
  %v747 = vpop.f32.mrb[0].mxu0
  %v748 = vpop.f32.mrb[0].mxu0
  %v749 = vadd.f32 0.0, %v748
  %v750 = vpop.f32.mrb[0].mxu0
  %751 = vmatprep.mubr.bf16.mxu0 0
  %752 = vmatmul.mubr.bf16.gmra.mrb[0].mxu0 %v474
  %v753 = vpop.f32.mrb[0].mxu0
  %v754 = vadd.f32 0.0, %v753
  %v755 = vpop.f32.mrb[0].mxu0
  %v756 = vpop.f32.mrb[0].mxu0
  %v757 = vadd.f32 0.0, %v756
  %v758 = vpop.f32.mrb[0].mxu0
  %759 = vmatprep.mubr.bf16.mxu0 0
  %760 = vmatmul.mubr.bf16.gmra.mrb[0].mxu0 %v475
  %v761 = vpop.f32.mrb[0].mxu0
  %v762 = vadd.f32 0.0, %v761
  %v763 = vpop.f32.mrb[0].mxu0
  %v764 = vpop.f32.mrb[0].mxu0
  %v765 = vadd.f32 0.0, %v764
  %v766 = vpop.f32.mrb[0].mxu0
  %767 = vmatprep.mubr.bf16.mxu0 0
  %768 = vmatmul.mubr.bf16.gmra.mrb[0].mxu0 %v476
  %v769 = vpop.f32.mrb[0].mxu0
  %v770 = vadd.f32 0.0, %v769
  %v771 = vpop.f32.mrb[0].mxu0
  %v772 = vpop.f32.mrb[0].mxu0
  %v773 = vadd.f32 0.0, %v772
  %v774 = vpop.f32.mrb[0].mxu0
  %775 = vmatprep.mubr.bf16.mxu0 0
  %776 = vmatmul.mubr.bf16.gmra.mrb[0].mxu0 %v477
  %v777 = vpop.f32.mrb[0].mxu0
  %v778 = vadd.f32 0.0, %v777
  %v779 = vpop.f32.mrb[0].mxu0
  %v780 = vpop.f32.mrb[0].mxu0
  %v781 = vadd.f32 0.0, %v780
  %v782 = vpop.f32.mrb[0].mxu0
  %783 = vmatprep.mubr.bf16.mxu0 0
  %784 = vmatmul.mubr.bf16.gmra.mrb[0].mxu0 %v478
  %v785 = vpop.f32.mrb[0].mxu0
  %v786 = vadd.f32 0.0, %v785
  %v787 = vpop.f32.mrb[0].mxu0
  %v788 = vpop.f32.mrb[0].mxu0
  %v789 = vadd.f32 0.0, %v788
  %v790 = vpop.f32.mrb[0].mxu0
  %791 = vmatprep.mubr.bf16.mxu0 0
  %792 = vmatmul.mubr.bf16.gmra.mrb[0].mxu0 %v479
  %v793 = vpop.f32.mrb[0].mxu0
  %v794 = vadd.f32 0.0, %v793
  %v795 = vpop.f32.mrb[0].mxu0
  %v796 = vpop.f32.mrb[0].mxu0
  %v797 = vadd.f32 0.0, %v796
  %v798 = vpop.f32.mrb[0].mxu0
  %799 = vmatprep.mubr.bf16.mxu0 0
  %800 = vmatmul.mubr.bf16.gmra.mrb[0].mxu0 %v480
  %v801 = vpop.f32.mrb[0].mxu0
  %v802 = vadd.f32 0.0, %v801
  %v803 = vpop.f32.mrb[0].mxu0
  %v804 = vpop.f32.mrb[0].mxu0
  %v805 = vadd.f32 0.0, %v804
  %v806 = vpop.f32.mrb[0].mxu0
  %807 = vmatprep.mubr.bf16.mxu0 0
  %808 = vmatmul.mubr.bf16.gmra.mrb[0].mxu0 %v481
  %v809 = vpop.f32.mrb[0].mxu0
  %v810 = vadd.f32 0.0, %v809
  %v811 = vpop.f32.mrb[0].mxu0
  %v812 = vpop.f32.mrb[0].mxu0
  %v813 = vadd.f32 0.0, %v812
  %v814 = vpop.f32.mrb[0].mxu0
  %815 = vmatprep.mubr.bf16.mxu0 0
  %816 = vmatmul.mubr.bf16.gmra.mrb[0].mxu0 %v482
  %v817 = vpop.f32.mrb[0].mxu0
  %v818 = vadd.f32 0.0, %v817
  %v819 = vpop.f32.mrb[0].mxu0
  %v820 = vpop.f32.mrb[0].mxu0
  %v821 = vadd.f32 0.0, %v820
  %v822 = vpop.f32.mrb[0].mxu0
  %823 = vmatprep.mubr.bf16.mxu0 0
  %824 = vmatmul.mubr.bf16.gmra.mrb[0].mxu0 %v483
  %v825 = vpop.f32.mrb[0].mxu0
  %v826 = vadd.f32 0.0, %v825
  %v827 = vpop.f32.mrb[0].mxu0
  %v828 = vpop.f32.mrb[0].mxu0
  %v829 = vadd.f32 0.0, %v828
  %v830 = vpop.f32.mrb[0].mxu0
  %831 = vmatprep.mubr.bf16.mxu0 0
  %832 = vmatmul.mubr.bf16.gmra.mrb[0].mxu0 %v484
  %v833 = vpop.f32.mrb[0].mxu0
  %v834 = vadd.f32 0.0, %v833
  %v835 = vpop.f32.mrb[0].mxu0
  %v836 = vpop.f32.mrb[0].mxu0
  %v837 = vadd.f32 0.0, %v836
  %v838 = vpop.f32.mrb[0].mxu0
  %839 = vmatprep.mubr.bf16.mxu0 0
  %840 = vmatmul.mubr.bf16.gmra.mrb[0].mxu0 %v485
  %v841 = vpop.f32.mrb[0].mxu0
  %v842 = vadd.f32 0.0, %v841
  %v843 = vpop.f32.mrb[0].mxu0
  %v844 = vpop.f32.mrb[0].mxu0
  %v845 = vadd.f32 0.0, %v844
  %v846 = vpop.f32.mrb[0].mxu0
  %847 = vmatprep.mubr.bf16.mxu0 0
  %848 = vmatmul.mubr.bf16.gmra.mrb[0].mxu0 %v486
  %v849 = vpop.f32.mrb[0].mxu0
  %v850 = vadd.f32 0.0, %v849
  %v851 = vpop.f32.mrb[0].mxu0
  %v852 = vpop.f32.mrb[0].mxu0
  %v853 = vadd.f32 0.0, %v852
  %v854 = vpop.f32.mrb[0].mxu0
  %855 = vdwg.mxu0
  %v920 = vunpack.c.l.b16 %v199
  %v921 = vunpack.c.l.b16 %v200
  %v922 = vunpack.c.l.b16 %v201
  %v923 = vunpack.c.l.b16 %v202
  %v924 = vunpack.c.l.b16 %v203
  %v925 = vunpack.c.l.b16 %v204
  %v926 = vunpack.c.l.b16 %v205
  %v927 = vunpack.c.l.b16 %v206
  %v928 = vunpack.c.l.b16 %v207
  %v929 = vunpack.c.l.b16 %v208
  %v930 = vunpack.c.l.b16 %v209
  %v931 = vunpack.c.l.b16 %v210
  %v932 = vunpack.c.l.b16 %v211
  %v933 = vunpack.c.l.b16 %v212
  %v934 = vunpack.c.l.b16 %v213
  %v935 = vunpack.c.l.b16 %v214
  %v936 = vunpack.c.l.b16 %v215
  %v937 = vunpack.c.l.b16 %v216
  %v938 = vunpack.c.l.b16 %v217
  %v939 = vunpack.c.l.b16 %v218
  %v940 = vunpack.c.l.b16 %v219
  %v941 = vunpack.c.l.b16 %v220
  %v942 = vunpack.c.l.b16 %v221
  %v943 = vunpack.c.l.b16 %v222
  %v944 = vunpack.c.l.b16 %v223
  %v945 = vunpack.c.l.b16 %v224
  %v946 = vunpack.c.l.b16 %v225
  %v947 = vunpack.c.l.b16 %v226
  %v948 = vunpack.c.l.b16 %v227
  %v949 = vunpack.c.l.b16 %v228
  %v950 = vunpack.c.l.b16 %v229
  %v951 = vunpack.c.l.b16 %v230
  %v952 = vunpack.c.l.b16 %v231
  %v953 = vunpack.c.l.b16 %v232
  %v954 = vunpack.c.l.b16 %v233
  %v955 = vunpack.c.l.b16 %v234
  %v956 = vunpack.c.l.b16 %v235
  %v957 = vunpack.c.l.b16 %v236
  %v958 = vunpack.c.l.b16 %v237
  %v959 = vunpack.c.l.b16 %v238
  %v960 = vunpack.c.l.b16 %v239
  %v961 = vunpack.c.l.b16 %v240
  %v962 = vunpack.c.l.b16 %v241
  %v963 = vunpack.c.l.b16 %v242
  %v964 = vunpack.c.l.b16 %v243
  %v965 = vunpack.c.l.b16 %v244
  %v966 = vunpack.c.l.b16 %v245
  %v967 = vunpack.c.l.b16 %v246
  %v968 = vunpack.c.l.b16 %v247
  %v969 = vunpack.c.l.b16 %v248
  %v970 = vunpack.c.l.b16 %v249
  %v971 = vunpack.c.l.b16 %v250
  %v972 = vunpack.c.l.b16 %v251
  %v973 = vunpack.c.l.b16 %v252
  %v974 = vunpack.c.l.b16 %v253
  %v975 = vunpack.c.l.b16 %v254
  %v976 = vunpack.c.l.b16 %v255
  %v977 = vunpack.c.l.b16 %v256
  %v978 = vunpack.c.l.b16 %v257
  %v979 = vunpack.c.l.b16 %v258
  %v980 = vunpack.c.l.b16 %v259
  %v981 = vunpack.c.l.b16 %v260
  %v982 = vunpack.c.l.b16 %v261
  %v983 = vunpack.c.l.b16 %v262
  %v984 = vpack.c.b16 %v921, %v920
  %v985 = vpack.c.b16 %v923, %v922
  %v986 = vpack.c.b16 %v925, %v924
  %v987 = vpack.c.b16 %v927, %v926
  %v988 = vpack.c.b16 %v929, %v928
  %v989 = vpack.c.b16 %v931, %v930
  %v990 = vpack.c.b16 %v933, %v932
  %v991 = vpack.c.b16 %v935, %v934
  %v992 = vpack.c.b16 %v937, %v936
  %v993 = vpack.c.b16 %v939, %v938
  %v994 = vpack.c.b16 %v941, %v940
  %v995 = vpack.c.b16 %v943, %v942
  %v996 = vpack.c.b16 %v945, %v944
  %v997 = vpack.c.b16 %v947, %v946
  %v998 = vpack.c.b16 %v949, %v948
  %v999 = vpack.c.b16 %v951, %v950
  %v1000 = vpack.c.b16 %v953, %v952
  %v1001 = vpack.c.b16 %v955, %v954
  %v1002 = vpack.c.b16 %v957, %v956
  %v1003 = vpack.c.b16 %v959, %v958
  %v1004 = vpack.c.b16 %v961, %v960
  %v1005 = vpack.c.b16 %v963, %v962
  %v1006 = vpack.c.b16 %v965, %v964
  %v1007 = vpack.c.b16 %v967, %v966
  %v1008 = vpack.c.b16 %v969, %v968
  %v1009 = vpack.c.b16 %v971, %v970
  %v1010 = vpack.c.b16 %v973, %v972
  %v1011 = vpack.c.b16 %v975, %v974
  %v1012 = vpack.c.b16 %v977, %v976
  %v1013 = vpack.c.b16 %v979, %v978
  %v1014 = vpack.c.b16 %v981, %v980
  %v1015 = vpack.c.b16 %v983, %v982
  %v1064 = vunpack.c.l.b16 %v101
  %v1065 = vunpack.c.l.b16 %v102
  %v1066 = vunpack.c.l.b16 %v103
  %v1067 = vunpack.c.l.b16 %v104
  %v1068 = vunpack.c.l.b16 %v105
  %v1069 = vunpack.c.l.b16 %v106
  %v1070 = vunpack.c.l.b16 %v107
  %v1071 = vunpack.c.l.b16 %v108
  %v1072 = vunpack.c.l.b16 %v109
  %v1073 = vunpack.c.l.b16 %v110
  %v1074 = vunpack.c.l.b16 %v111
  %v1075 = vunpack.c.l.b16 %v112
  %v1076 = vunpack.c.l.b16 %v113
  %v1077 = vunpack.c.l.b16 %v114
  %v1078 = vunpack.c.l.b16 %v115
  %v1079 = vunpack.c.l.b16 %v116
  %v1080 = vpack.c.b16 %v1065, %v1064
  %v1081 = vpack.c.b16 %v1067, %v1066
  %v1082 = vpack.c.b16 %v1069, %v1068
  %v1083 = vpack.c.b16 %v1071, %v1070
  %v1084 = vpack.c.b16 %v1073, %v1072
  %v1085 = vpack.c.b16 %v1075, %v1074
  %v1086 = vpack.c.b16 %v1077, %v1076
  %v1087 = vpack.c.b16 %v1079, %v1078
  %1096 = vmatprep.subr.bf16.mxu0 0
  %1097 = vmatpush1.bf16.msra.mxu0 %v1080
  %1098 = vmatprep.subr.bf16.mxu0 0
  %1099 = vmatpush1.bf16.msra.mxu0 %v1081
  %1100 = vmatprep.subr.bf16.mxu0 0
  %1101 = vmatpush1.bf16.msra.mxu0 %v1082
  %1102 = vmatprep.subr.bf16.mxu0 0
  %1103 = vmatpush1.bf16.msra.mxu0 %v1083
  %1104 = vmatprep.subr.bf16.mxu0 0
  %1105 = vmatpush1.bf16.msra.mxu0 %v1084
  %1106 = vmatprep.subr.bf16.mxu0 0
  %1107 = vmatpush1.bf16.msra.mxu0 %v1085
  %1108 = vmatprep.subr.bf16.mxu0 0
  %1109 = vmatpush1.bf16.msra.mxu0 %v1086
  %1110 = vmatprep.subr.bf16.mxu0 0
  %1111 = vmatpush1.bf16.msra.mxu0 %v1087
  %1112 = vmatprep.subr.bf16.mxu0 0
  %1113 = vmatpush1.bf16.msra.mxu0 0
  %1114 = vmatprep.subr.bf16.mxu0 0
  %1115 = vmatpush1.bf16.msra.mxu0 0
  %1116 = vmatprep.subr.bf16.mxu0 0
  %1117 = vmatpush1.bf16.msra.mxu0 0
  %1118 = vmatprep.subr.bf16.mxu0 0
  %1119 = vmatpush1.bf16.msra.mxu0 0
  %1120 = vmatprep.subr.bf16.mxu0 0
  %1121 = vmatpush1.bf16.msra.mxu0 0
  %1122 = vmatprep.subr.bf16.mxu0 0
  %1123 = vmatpush1.bf16.msra.mxu0 0
  %1124 = vmatprep.subr.bf16.mxu0 0
  %1125 = vmatpush1.bf16.msra.mxu0 0
  %1126 = vmatprep.subr.bf16.mxu0 0
  %1127 = vmatpush1.bf16.msra.mxu0 0
  %1128 = vmatprep.mubr.bf16.mxu0 0
  %1129 = vmatmul.mubr.bf16.gmra.mrb[0].mxu0 %v984
  %v1130 = vpop.f32.mrb[0].mxu0
  %v1131 = vadd.f32 %v602, %v1130
  %v1132 = vpop.f32.mrb[0].mxu0
  %v1133 = vpop.f32.mrb[0].mxu0
  %v1134 = vadd.f32 %v605, %v1133
  %v1135 = vpop.f32.mrb[0].mxu0
  %1136 = vmatprep.mubr.bf16.mxu0 0
  %1137 = vmatmul.mubr.bf16.gmra.mrb[0].mxu0 %v985
  %v1138 = vpop.f32.mrb[0].mxu0
  %v1139 = vadd.f32 %v610, %v1138
  %v1140 = vpop.f32.mrb[0].mxu0
  %v1141 = vpop.f32.mrb[0].mxu0
  %v1142 = vadd.f32 %v613, %v1141
  %v1143 = vpop.f32.mrb[0].mxu0
  %1144 = vmatprep.mubr.bf16.mxu0 0
  %1145 = vmatmul.mubr.bf16.gmra.mrb[0].mxu0 %v986
  %v1146 = vpop.f32.mrb[0].mxu0
  %v1147 = vadd.f32 %v618, %v1146
  %v1148 = vpop.f32.mrb[0].mxu0
  %v1149 = vpop.f32.mrb[0].mxu0
  %v1150 = vadd.f32 %v621, %v1149
  %v1151 = vpop.f32.mrb[0].mxu0
  %1152 = vmatprep.mubr.bf16.mxu0 0
  %1153 = vmatmul.mubr.bf16.gmra.mrb[0].mxu0 %v987
  %v1154 = vpop.f32.mrb[0].mxu0
  %v1155 = vadd.f32 %v626, %v1154
  %v1156 = vpop.f32.mrb[0].mxu0
  %v1157 = vpop.f32.mrb[0].mxu0
  %v1158 = vadd.f32 %v629, %v1157
  %v1159 = vpop.f32.mrb[0].mxu0
  %1160 = vmatprep.mubr.bf16.mxu0 0
  %1161 = vmatmul.mubr.bf16.gmra.mrb[0].mxu0 %v988
  %v1162 = vpop.f32.mrb[0].mxu0
  %v1163 = vadd.f32 %v634, %v1162
  %v1164 = vpop.f32.mrb[0].mxu0
  %v1165 = vpop.f32.mrb[0].mxu0
  %v1166 = vadd.f32 %v637, %v1165
  %v1167 = vpop.f32.mrb[0].mxu0
  %1168 = vmatprep.mubr.bf16.mxu0 0
  %1169 = vmatmul.mubr.bf16.gmra.mrb[0].mxu0 %v989
  %v1170 = vpop.f32.mrb[0].mxu0
  %v1171 = vadd.f32 %v642, %v1170
  %v1172 = vpop.f32.mrb[0].mxu0
  %v1173 = vpop.f32.mrb[0].mxu0
  %v1174 = vadd.f32 %v645, %v1173
  %v1175 = vpop.f32.mrb[0].mxu0
  %1176 = vmatprep.mubr.bf16.mxu0 0
  %1177 = vmatmul.mubr.bf16.gmra.mrb[0].mxu0 %v990
  %v1178 = vpop.f32.mrb[0].mxu0
  %v1179 = vadd.f32 %v650, %v1178
  %v1180 = vpop.f32.mrb[0].mxu0
  %v1181 = vpop.f32.mrb[0].mxu0
  %v1182 = vadd.f32 %v653, %v1181
  %v1183 = vpop.f32.mrb[0].mxu0
  %1184 = vmatprep.mubr.bf16.mxu0 0
  %1185 = vmatmul.mubr.bf16.gmra.mrb[0].mxu0 %v991
  %v1186 = vpop.f32.mrb[0].mxu0
  %v1187 = vadd.f32 %v658, %v1186
  %v1188 = vpop.f32.mrb[0].mxu0
  %v1189 = vpop.f32.mrb[0].mxu0
  %v1190 = vadd.f32 %v661, %v1189
  %v1191 = vpop.f32.mrb[0].mxu0
  %1192 = vmatprep.mubr.bf16.mxu0 0
  %1193 = vmatmul.mubr.bf16.gmra.mrb[0].mxu0 %v992
  %v1194 = vpop.f32.mrb[0].mxu0
  %v1195 = vadd.f32 %v666, %v1194
  %v1196 = vpop.f32.mrb[0].mxu0
  %v1197 = vpop.f32.mrb[0].mxu0
  %v1198 = vadd.f32 %v669, %v1197
  %v1199 = vpop.f32.mrb[0].mxu0
  %1200 = vmatprep.mubr.bf16.mxu0 0
  %1201 = vmatmul.mubr.bf16.gmra.mrb[0].mxu0 %v993
  %v1202 = vpop.f32.mrb[0].mxu0
  %v1203 = vadd.f32 %v674, %v1202
  %v1204 = vpop.f32.mrb[0].mxu0
  %v1205 = vpop.f32.mrb[0].mxu0
  %v1206 = vadd.f32 %v677, %v1205
  %v1207 = vpop.f32.mrb[0].mxu0
  %1208 = vmatprep.mubr.bf16.mxu0 0
  %1209 = vmatmul.mubr.bf16.gmra.mrb[0].mxu0 %v994
  %v1210 = vpop.f32.mrb[0].mxu0
  %v1211 = vadd.f32 %v682, %v1210
  %v1212 = vpop.f32.mrb[0].mxu0
  %v1213 = vpop.f32.mrb[0].mxu0
  %v1214 = vadd.f32 %v685, %v1213
  %v1215 = vpop.f32.mrb[0].mxu0
  %1216 = vmatprep.mubr.bf16.mxu0 0
  %1217 = vmatmul.mubr.bf16.gmra.mrb[0].mxu0 %v995
  %v1218 = vpop.f32.mrb[0].mxu0
  %v1219 = vadd.f32 %v690, %v1218
  %v1220 = vpop.f32.mrb[0].mxu0
  %v1221 = vpop.f32.mrb[0].mxu0
  %v1222 = vadd.f32 %v693, %v1221
  %v1223 = vpop.f32.mrb[0].mxu0
  %1224 = vmatprep.mubr.bf16.mxu0 0
  %1225 = vmatmul.mubr.bf16.gmra.mrb[0].mxu0 %v996
  %v1226 = vpop.f32.mrb[0].mxu0
  %v1227 = vadd.f32 %v698, %v1226
  %v1228 = vpop.f32.mrb[0].mxu0
  %v1229 = vpop.f32.mrb[0].mxu0
  %v1230 = vadd.f32 %v701, %v1229
  %v1231 = vpop.f32.mrb[0].mxu0
  %1232 = vmatprep.mubr.bf16.mxu0 0
  %1233 = vmatmul.mubr.bf16.gmra.mrb[0].mxu0 %v997
  %v1234 = vpop.f32.mrb[0].mxu0
  %v1235 = vadd.f32 %v706, %v1234
  %v1236 = vpop.f32.mrb[0].mxu0
  %v1237 = vpop.f32.mrb[0].mxu0
  %v1238 = vadd.f32 %v709, %v1237
  %v1239 = vpop.f32.mrb[0].mxu0
  %1240 = vmatprep.mubr.bf16.mxu0 0
  %1241 = vmatmul.mubr.bf16.gmra.mrb[0].mxu0 %v998
  %v1242 = vpop.f32.mrb[0].mxu0
  %v1243 = vadd.f32 %v714, %v1242
  %v1244 = vpop.f32.mrb[0].mxu0
  %v1245 = vpop.f32.mrb[0].mxu0
  %v1246 = vadd.f32 %v717, %v1245
  %v1247 = vpop.f32.mrb[0].mxu0
  %1248 = vmatprep.mubr.bf16.mxu0 0
  %1249 = vmatmul.mubr.bf16.gmra.mrb[0].mxu0 %v999
  %v1250 = vpop.f32.mrb[0].mxu0
  %v1251 = vadd.f32 %v722, %v1250
  %v1252 = vpop.f32.mrb[0].mxu0
  %v1253 = vpop.f32.mrb[0].mxu0
  %v1254 = vadd.f32 %v725, %v1253
  %v1255 = vpop.f32.mrb[0].mxu0
  %1256 = vmatprep.mubr.bf16.mxu0 0
  %1257 = vmatmul.mubr.bf16.gmra.mrb[0].mxu0 %v1000
  %v1258 = vpop.f32.mrb[0].mxu0
  %v1259 = vadd.f32 %v730, %v1258
  %v1260 = vpop.f32.mrb[0].mxu0
  %v1261 = vpop.f32.mrb[0].mxu0
  %v1262 = vadd.f32 %v733, %v1261
  %v1263 = vpop.f32.mrb[0].mxu0
  %1264 = vmatprep.mubr.bf16.mxu0 0
  %1265 = vmatmul.mubr.bf16.gmra.mrb[0].mxu0 %v1001
  %v1266 = vpop.f32.mrb[0].mxu0
  %v1267 = vadd.f32 %v738, %v1266
  %v1268 = vpop.f32.mrb[0].mxu0
  %v1269 = vpop.f32.mrb[0].mxu0
  %v1270 = vadd.f32 %v741, %v1269
  %v1271 = vpop.f32.mrb[0].mxu0
  %1272 = vmatprep.mubr.bf16.mxu0 0
  %1273 = vmatmul.mubr.bf16.gmra.mrb[0].mxu0 %v1002
  %v1274 = vpop.f32.mrb[0].mxu0
  %v1275 = vadd.f32 %v746, %v1274
  %v1276 = vpop.f32.mrb[0].mxu0
  %v1277 = vpop.f32.mrb[0].mxu0
  %v1278 = vadd.f32 %v749, %v1277
  %v1279 = vpop.f32.mrb[0].mxu0
  %1280 = vmatprep.mubr.bf16.mxu0 0
  %1281 = vmatmul.mubr.bf16.gmra.mrb[0].mxu0 %v1003
  %v1282 = vpop.f32.mrb[0].mxu0
  %v1283 = vadd.f32 %v754, %v1282
  %v1284 = vpop.f32.mrb[0].mxu0
  %v1285 = vpop.f32.mrb[0].mxu0
  %v1286 = vadd.f32 %v757, %v1285
  %v1287 = vpop.f32.mrb[0].mxu0
  %1288 = vmatprep.mubr.bf16.mxu0 0
  %1289 = vmatmul.mubr.bf16.gmra.mrb[0].mxu0 %v1004
  %v1290 = vpop.f32.mrb[0].mxu0
  %v1291 = vadd.f32 %v762, %v1290
  %v1292 = vpop.f32.mrb[0].mxu0
  %v1293 = vpop.f32.mrb[0].mxu0
  %v1294 = vadd.f32 %v765, %v1293
  %v1295 = vpop.f32.mrb[0].mxu0
  %1296 = vmatprep.mubr.bf16.mxu0 0
  %1297 = vmatmul.mubr.bf16.gmra.mrb[0].mxu0 %v1005
  %v1298 = vpop.f32.mrb[0].mxu0
  %v1299 = vadd.f32 %v770, %v1298
  %v1300 = vpop.f32.mrb[0].mxu0
  %v1301 = vpop.f32.mrb[0].mxu0
  %v1302 = vadd.f32 %v773, %v1301
  %v1303 = vpop.f32.mrb[0].mxu0
  %1304 = vmatprep.mubr.bf16.mxu0 0
  %1305 = vmatmul.mubr.bf16.gmra.mrb[0].mxu0 %v1006
  %v1306 = vpop.f32.mrb[0].mxu0
  %v1307 = vadd.f32 %v778, %v1306
  %v1308 = vpop.f32.mrb[0].mxu0
  %v1309 = vpop.f32.mrb[0].mxu0
  %v1310 = vadd.f32 %v781, %v1309
  %v1311 = vpop.f32.mrb[0].mxu0
  %1312 = vmatprep.mubr.bf16.mxu0 0
  %1313 = vmatmul.mubr.bf16.gmra.mrb[0].mxu0 %v1007
  %v1314 = vpop.f32.mrb[0].mxu0
  %v1315 = vadd.f32 %v786, %v1314
  %v1316 = vpop.f32.mrb[0].mxu0
  %v1317 = vpop.f32.mrb[0].mxu0
  %v1318 = vadd.f32 %v789, %v1317
  %v1319 = vpop.f32.mrb[0].mxu0
  %1320 = vmatprep.mubr.bf16.mxu0 0
  %1321 = vmatmul.mubr.bf16.gmra.mrb[0].mxu0 %v1008
  %v1322 = vpop.f32.mrb[0].mxu0
  %v1323 = vadd.f32 %v794, %v1322
  %v1324 = vpop.f32.mrb[0].mxu0
  %v1325 = vpop.f32.mrb[0].mxu0
  %v1326 = vadd.f32 %v797, %v1325
  %v1327 = vpop.f32.mrb[0].mxu0
  %1328 = vmatprep.mubr.bf16.mxu0 0
  %1329 = vmatmul.mubr.bf16.gmra.mrb[0].mxu0 %v1009
  %v1330 = vpop.f32.mrb[0].mxu0
  %v1331 = vadd.f32 %v802, %v1330
  %v1332 = vpop.f32.mrb[0].mxu0
  %v1333 = vpop.f32.mrb[0].mxu0
  %v1334 = vadd.f32 %v805, %v1333
  %v1335 = vpop.f32.mrb[0].mxu0
  %1336 = vmatprep.mubr.bf16.mxu0 0
  %1337 = vmatmul.mubr.bf16.gmra.mrb[0].mxu0 %v1010
  %v1338 = vpop.f32.mrb[0].mxu0
  %v1339 = vadd.f32 %v810, %v1338
  %v1340 = vpop.f32.mrb[0].mxu0
  %v1341 = vpop.f32.mrb[0].mxu0
  %v1342 = vadd.f32 %v813, %v1341
  %v1343 = vpop.f32.mrb[0].mxu0
  %1344 = vmatprep.mubr.bf16.mxu0 0
  %1345 = vmatmul.mubr.bf16.gmra.mrb[0].mxu0 %v1011
  %v1346 = vpop.f32.mrb[0].mxu0
  %v1347 = vadd.f32 %v818, %v1346
  %v1348 = vpop.f32.mrb[0].mxu0
  %v1349 = vpop.f32.mrb[0].mxu0
  %v1350 = vadd.f32 %v821, %v1349
  %v1351 = vpop.f32.mrb[0].mxu0
  %1352 = vmatprep.mubr.bf16.mxu0 0
  %1353 = vmatmul.mubr.bf16.gmra.mrb[0].mxu0 %v1012
  %v1354 = vpop.f32.mrb[0].mxu0
  %v1355 = vadd.f32 %v826, %v1354
  %v1356 = vpop.f32.mrb[0].mxu0
  %v1357 = vpop.f32.mrb[0].mxu0
  %v1358 = vadd.f32 %v829, %v1357
  %v1359 = vpop.f32.mrb[0].mxu0
  %1360 = vmatprep.mubr.bf16.mxu0 0
  %1361 = vmatmul.mubr.bf16.gmra.mrb[0].mxu0 %v1013
  %v1362 = vpop.f32.mrb[0].mxu0
  %v1363 = vadd.f32 %v834, %v1362
  %v1364 = vpop.f32.mrb[0].mxu0
  %v1365 = vpop.f32.mrb[0].mxu0
  %v1366 = vadd.f32 %v837, %v1365
  %v1367 = vpop.f32.mrb[0].mxu0
  %1368 = vmatprep.mubr.bf16.mxu0 0
  %1369 = vmatmul.mubr.bf16.gmra.mrb[0].mxu0 %v1014
  %v1370 = vpop.f32.mrb[0].mxu0
  %v1371 = vadd.f32 %v842, %v1370
  %v1372 = vpop.f32.mrb[0].mxu0
  %v1373 = vpop.f32.mrb[0].mxu0
  %v1374 = vadd.f32 %v845, %v1373
  %v1375 = vpop.f32.mrb[0].mxu0
  %1376 = vmatprep.mubr.bf16.mxu0 0
  %1377 = vmatmul.mubr.bf16.gmra.mrb[0].mxu0 %v1015
  %v1378 = vpop.f32.mrb[0].mxu0
  %v1379 = vadd.f32 %v850, %v1378
  %v1380 = vpop.f32.mrb[0].mxu0
  %v1381 = vpop.f32.mrb[0].mxu0
  %v1382 = vadd.f32 %v853, %v1381
  %v1383 = vpop.f32.mrb[0].mxu0
  %1384 = vdwg.mxu0
  %v1385 = vadd.f32 %v135, %v1131
  %v1386 = vadd.f32 %v136, %v1134
  %v1387 = vadd.f32 %v137, %v1139
  %v1388 = vadd.f32 %v138, %v1142
  %v1389 = vadd.f32 %v139, %v1147
  %v1390 = vadd.f32 %v140, %v1150
  %v1391 = vadd.f32 %v141, %v1155
  %v1392 = vadd.f32 %v142, %v1158
  %v1393 = vadd.f32 %v143, %v1163
  %v1394 = vadd.f32 %v144, %v1166
  %v1395 = vadd.f32 %v145, %v1171
  %v1396 = vadd.f32 %v146, %v1174
  %v1397 = vadd.f32 %v147, %v1179
  %v1398 = vadd.f32 %v148, %v1182
  %v1399 = vadd.f32 %v149, %v1187
  %v1400 = vadd.f32 %v150, %v1190
  %v1401 = vadd.f32 %v151, %v1195
  %v1402 = vadd.f32 %v152, %v1198
  %v1403 = vadd.f32 %v153, %v1203
  %v1404 = vadd.f32 %v154, %v1206
  %v1405 = vadd.f32 %v155, %v1211
  %v1406 = vadd.f32 %v156, %v1214
  %v1407 = vadd.f32 %v157, %v1219
  %v1408 = vadd.f32 %v158, %v1222
  %v1409 = vadd.f32 %v159, %v1227
  %v1410 = vadd.f32 %v160, %v1230
  %v1411 = vadd.f32 %v161, %v1235
  %v1412 = vadd.f32 %v162, %v1238
  %v1413 = vadd.f32 %v163, %v1243
  %v1414 = vadd.f32 %v164, %v1246
  %v1415 = vadd.f32 %v165, %v1251
  %v1416 = vadd.f32 %v166, %v1254
  %v1417 = vadd.f32 %v167, %v1259
  %v1418 = vadd.f32 %v168, %v1262
  %v1419 = vadd.f32 %v169, %v1267
  %v1420 = vadd.f32 %v170, %v1270
  %v1421 = vadd.f32 %v171, %v1275
  %v1422 = vadd.f32 %v172, %v1278
  %v1423 = vadd.f32 %v173, %v1283
  %v1424 = vadd.f32 %v174, %v1286
  %v1425 = vadd.f32 %v175, %v1291
  %v1426 = vadd.f32 %v176, %v1294
  %v1427 = vadd.f32 %v177, %v1299
  %v1428 = vadd.f32 %v178, %v1302
  %v1429 = vadd.f32 %v179, %v1307
  %v1430 = vadd.f32 %v180, %v1310
  %v1431 = vadd.f32 %v181, %v1315
  %v1432 = vadd.f32 %v182, %v1318
  %v1433 = vadd.f32 %v183, %v1323
  %v1434 = vadd.f32 %v184, %v1326
  %v1435 = vadd.f32 %v185, %v1331
  %v1436 = vadd.f32 %v186, %v1334
  %v1437 = vadd.f32 %v187, %v1339
  %v1438 = vadd.f32 %v188, %v1342
  %v1439 = vadd.f32 %v189, %v1347
  %v1440 = vadd.f32 %v190, %v1350
  %v1441 = vadd.f32 %v191, %v1355
  %v1442 = vadd.f32 %v192, %v1358
  %v1443 = vadd.f32 %v193, %v1363
  %v1444 = vadd.f32 %v194, %v1366
  %v1445 = vadd.f32 %v195, %v1371
  %v1446 = vadd.f32 %v196, %v1374
  %v1447 = vadd.f32 %v197, %v1379
  %v1448 = vadd.f32 %v198, %v1382
  %1449 = vst [vmem:[%s5] sm:$0xff] %v1385
  %1450 = vst [vmem:[%s5 + $0x8] sm:$0xff] %v1386
  %1451 = vst [vmem:[%s5 + $0x10] sm:$0xff] %v1387
  %1452 = vst [vmem:[%s5 + $0x18] sm:$0xff] %v1388
  %1453 = vst [vmem:[%s5 + $0x20] sm:$0xff] %v1389
  %1454 = vst [vmem:[%s5 + $0x28] sm:$0xff] %v1390
  %1455 = vst [vmem:[%s5 + $0x30] sm:$0xff] %v1391
  %1456 = vst [vmem:[%s5 + $0x38] sm:$0xff] %v1392
  %1457 = vst [vmem:[%s5 + $0x40] sm:$0xff] %v1393
  %1458 = vst [vmem:[%s5 + $0x48] sm:$0xff] %v1394
  %1459 = vst [vmem:[%s5 + $0x50] sm:$0xff] %v1395
  %1460 = vst [vmem:[%s5 + $0x58] sm:$0xff] %v1396
  %1461 = vst [vmem:[%s5 + $0x60] sm:$0xff] %v1397
  %1462 = vst [vmem:[%s5 + $0x68] sm:$0xff] %v1398
  %1463 = vst [vmem:[%s5 + $0x70] sm:$0xff] %v1399
  %1464 = vst [vmem:[%s5 + $0x78] sm:$0xff] %v1400
  %1465 = vst [vmem:[%s5 + $0x80] sm:$0xff] %v1401
  %1466 = vst [vmem:[%s5 + $0x88] sm:$0xff] %v1402
  %1467 = vst [vmem:[%s5 + $0x90] sm:$0xff] %v1403
  %1468 = vst [vmem:[%s5 + $0x98] sm:$0xff] %v1404
  %1469 = vst [vmem:[%s5 + $0xa0] sm:$0xff] %v1405
  %1470 = vst [vmem:[%s5 + $0xa8] sm:$0xff] %v1406
  %1471 = vst [vmem:[%s5 + $0xb0] sm:$0xff] %v1407
  %1472 = vst [vmem:[%s5 + $0xb8] sm:$0xff] %v1408
  %1473 = vst [vmem:[%s5 + $0xc0] sm:$0xff] %v1409
  %1474 = vst [vmem:[%s5 + $0xc8] sm:$0xff] %v1410
  %1475 = vst [vmem:[%s5 + $0xd0] sm:$0xff] %v1411
  %1476 = vst [vmem:[%s5 + $0xd8] sm:$0xff] %v1412
  %1477 = vst [vmem:[%s5 + $0xe0] sm:$0xff] %v1413
  %1478 = vst [vmem:[%s5 + $0xe8] sm:$0xff] %v1414
  %1479 = vst [vmem:[%s5 + $0xf0] sm:$0xff] %v1415
  %1480 = vst [vmem:[%s5 + $0xf8] sm:$0xff] %v1416
  %1481 = vst [vmem:[%s5 + $0x100] sm:$0xff] %v1417
  %1482 = vst [vmem:[%s5 + $0x108] sm:$0xff] %v1418
  %1483 = vst [vmem:[%s5 + $0x110] sm:$0xff] %v1419
  %1484 = vst [vmem:[%s5 + $0x118] sm:$0xff] %v1420
  %1485 = vst [vmem:[%s5 + $0x120] sm:$0xff] %v1421
  %1486 = vst [vmem:[%s5 + $0x128] sm:$0xff] %v1422
  %1487 = vst [vmem:[%s5 + $0x130] sm:$0xff] %v1423
  %1488 = vst [vmem:[%s5 + $0x138] sm:$0xff] %v1424
  %1489 = vst [vmem:[%s5 + $0x140] sm:$0xff] %v1425
  %1490 = vst [vmem:[%s5 + $0x148] sm:$0xff] %v1426
  %1491 = vst [vmem:[%s5 + $0x150] sm:$0xff] %v1427
  %1492 = vst [vmem:[%s5 + $0x158] sm:$0xff] %v1428
  %1493 = vst [vmem:[%s5 + $0x160] sm:$0xff] %v1429
  %1494 = vst [vmem:[%s5 + $0x168] sm:$0xff] %v1430
  %1495 = vst [vmem:[%s5 + $0x170] sm:$0xff] %v1431
  %1496 = vst [vmem:[%s5 + $0x178] sm:$0xff] %v1432
  %1497 = vst [vmem:[%s5 + $0x180] sm:$0xff] %v1433
  %1498 = vst [vmem:[%s5 + $0x188] sm:$0xff] %v1434
  %1499 = vst [vmem:[%s5 + $0x190] sm:$0xff] %v1435
  %1500 = vst [vmem:[%s5 + $0x198] sm:$0xff] %v1436
  %1501 = vst [vmem:[%s5 + $0x1a0] sm:$0xff] %v1437
  %1502 = vst [vmem:[%s5 + $0x1a8] sm:$0xff] %v1438
  %1503 = vst [vmem:[%s5 + $0x1b0] sm:$0xff] %v1439
  %1504 = vst [vmem:[%s5 + $0x1b8] sm:$0xff] %v1440
  %1505 = vst [vmem:[%s5 + $0x1c0] sm:$0xff] %v1441
  %1506 = vst [vmem:[%s5 + $0x1c8] sm:$0xff] %v1442
  %1507 = vst [vmem:[%s5 + $0x1d0] sm:$0xff] %v1443
  %1508 = vst [vmem:[%s5 + $0x1d8] sm:$0xff] %v1444
  %1509 = vst [vmem:[%s5 + $0x1e0] sm:$0xff] %v1445
  %1510 = vst [vmem:[%s5 + $0x1e8] sm:$0xff] %v1446
  %1511 = vst [vmem:[%s5 + $0x1f0] sm:$0xff] %v1447
  %1512 = vst [vmem:[%s5 + $0x1f8] sm:$0xff] %v1448
  // Predicated region
  $region26: #{cconv2d_layer.1} parent=0 // pred_check
    _
  $region27: #{cconv2d_layer.1} parent=0 // pred_check_branch
    %1514 = sbr.rel (0) target = $region29
  $region28: #{cconv2d_layer.1} parent=0 // pred_region
    _
  $region29: #{cconv2d_layer.1} parent=0 // pred_fallthru
    _
  // Predicated region
  $region30: #{cconv2d_layer.1} parent=0 // pred_check
    _
  $region31: #{cconv2d_layer.1} parent=0 // pred_check_branch
    %1516 = sbr.rel (0) target = $region33
  $region32: #{cconv2d_layer.1} parent=0 // pred_region
    _
  $region33: #{cconv2d_layer.1} parent=0 // pred_fallthru
    _

</llo_original>
